<compile_context>
chip_gen: v6e
topology: v6e:2x2x1
jax: 0.10.0
libtpu: 0.0.40
codegen_flags: <defaults>
</compile_context>

<pallas_src>
import functools

import jax
import jax.numpy as jnp
from jax import lax
from jax.experimental import pallas as pl
from jax.experimental.pallas import tpu as pltpu


# ------------------------------ Pallas kernel ------------------------------ #
def _gemcnn_kernel(x_ref, w1_ref, b1_ref, p_ref, w2_ref, b2_ref,
                   wf1_ref, bf1_ref, wf2_ref, bf2_ref, out_ref, *, HW, eps):
    """One grid step = full GeMCNN forward for Bt lane-packed images.

    Lane packing: image b of this step owns lanes [b*n : (b+1)*n] of every
    activation row, so all weights are block-diagonal over the Bt images and
    every intermediate stays a plain 2-D tile (no in-kernel relayouts).

    x_ref   : [1, HW, Bt*27]    im2col patches, (kh,kw,c)-minor per image
    w1_ref  : [Bt*27, Bt*32]    block-diag conv1 weight            (resident)
    b1_ref  : [1, Bt*32]        conv1 bias, tiled over the Bt images
    p_ref   : [1]               learnable GeM power p (SMEM scalar)
    w2_ref  : [Bt*32, Bt*64]    block-diag conv2 center tap (the only tap that
                                touches non-zero data on the 1x1 GeM output)
    b2_ref  : [1, Bt*64]
    wf1_ref : [Bt*64, Bt*128],  bf1_ref: [1, Bt*128]   fc1
    wf2_ref : [Bt*128, Bt*32],  bf2_ref: [1, Bt*32]    fc2 (classes padded 10->32)
    out_ref : [1, 1, Bt*32]     lane-packed (zero-padded) logits for this step
    """
    patches = x_ref[0]                                 # [HW, Bt*27]
    p = p_ref[0]

    # -------- conv1 as a single MXU matmul over the fused K = 9*C axis ------
    acc = jnp.dot(patches, w1_ref[...],
                  preferred_element_type=jnp.float32) + b1_ref[...]   # [HW, Bt*32]

    # -------- ReLU + GeM pow -------------------------------------------------
    # clamp(relu(x), min=eps) == max(x, eps); x**p computed as exp(p*log(x)).
    # Lane-dense (Bt*32 lanes), so the single EUP slot sees full vregs.
    g = jnp.maximum(acc, eps)
    gp = jnp.exp(p * jnp.log(g))                                      # [HW, Bt*32]

    # -------- GeM mean over all HW pixels as a ones-vector MXU matmul -------
    # (keeps the big reduction off the VALU/XLU), then the 1/p root.
    ones_row = jnp.ones((1, HW), dtype=jnp.float32)
    pooled = jnp.dot(ones_row, gp, preferred_element_type=jnp.float32) * (1.0 / HW)
    pooled = jnp.exp(jnp.log(pooled) / p)                             # [1, Bt*32]

    # -------- conv2 on the 1x1 pooled map: only the center tap contributes;
    # ReLU followed by GeM over a 1x1 window reduces to max(., eps). ----------
    h = jnp.dot(pooled, w2_ref[...], preferred_element_type=jnp.float32) + b2_ref[...]
    h = jnp.maximum(h, eps)                                           # [1, Bt*64]

    # -------- fc1 + ReLU, dropout (identity at inference), fc2 ---------------
    f = jnp.dot(h, wf1_ref[...], preferred_element_type=jnp.float32) + bf1_ref[...]
    f = jnp.maximum(f, 0.0)                                           # [1, Bt*128]
    # TODO(synk): nn.Dropout(0.25) is identity in eval mode; a training-mode
    # kernel would mask here with pltpu.prng_seed / pltpu.prng_random_bits.
    logits = jnp.dot(f, wf2_ref[...], preferred_element_type=jnp.float32) + bf2_ref[...]
    out_ref[0] = logits.astype(out_ref.dtype)                         # [1, Bt*32]


# ------------------------------- JAX wrapper -------------------------------- #
def gemcnn_forward(x, params, *, eps=1e-6):
    """Full GeMCNN forward. x: [B, C, H, W] (NCHW, matches PyTorch).
    Returns logits [B, num_classes]."""
    B, C, H, W = x.shape
    KH, KW = 3, 3
    K = KH * KW * C
    HW = H * W
    OC1 = params["conv1_w"].shape[0]
    OC2 = params["conv2_w"].shape[0]
    NH = params["fc1_w"].shape[0]
    NC = params["fc2_w"].shape[0]
    NCp = 32                      # fc2 outputs zero-padded -> lane-dense stores

    # ---- batch blocking: Bt images lane-packed per grid step.  Keep
    # Bt*OC1 <= 128 lanes and >= 2 grid steps when B >= 2 (v7x has 2 TCs).
    if B >= 8:
        Bt = 4
    elif B >= 2:
        Bt = B // 2
    else:
        Bt = 1
    nb = -(-B // Bt)              # number of grid steps
    Bpad = nb * Bt

    f32 = jnp.float32
    # ---- im2col in the wrapper: lane-dense, contiguous patches rows.  The
    # ~9x activation-byte inflation is ~100 KiB/image -- far cheaper than the
    # per-tap in-kernel relayout copies it replaces (kernel is layout-bound,
    # not HBM-bound, at these sizes).
    xp = jnp.pad(x.astype(f32), ((0, 0), (0, 0), (1, 1), (1, 1)))
    xp = jnp.transpose(xp, (0, 2, 3, 1))                         # [B, H+2, W+2, C]
    taps = [xp[:, kh:kh + H, kw:kw + W, :] for kh in range(KH) for kw in range(KW)]
    patches = jnp.concatenate(taps, axis=-1).reshape(B, HW, K)    # (kh,kw,c)-minor
    if Bpad != B:
        patches = jnp.pad(patches, ((0, Bpad - B), (0, 0), (0, 0)))
    # pack Bt images along the lane axis: [nb, HW, Bt*K]
    patches = patches.reshape(nb, Bt, HW, K).transpose(0, 2, 1, 3).reshape(nb, HW, Bt * K)

    def bd(w):                    # block-diagonal over the Bt lane-packed images
        return jnp.kron(jnp.eye(Bt, dtype=f32), w.astype(f32))

    def tile_bias(b):
        return jnp.tile(b.astype(f32).reshape(1, -1), (1, Bt))

    # conv1 weight: [OC1, C, KH, KW] -> [K, OC1] with (kh,kw,c)-minor rows.
    w1 = bd(jnp.transpose(params["conv1_w"], (2, 3, 1, 0)).reshape(K, OC1))
    b1 = tile_bias(params["conv1_b"])
    # conv2 sees a 1x1 (GeM-pooled) map; with padding=1 only the center tap
    # multiplies non-zero data, so conv2 collapses to an [OC1, OC2] matmul.
    w2 = bd(jnp.transpose(params["conv2_w"][:, :, KH // 2, KW // 2], (1, 0)))
    b2 = tile_bias(params["conv2_b"])
    wf1 = bd(jnp.transpose(params["fc1_w"], (1, 0)))
    bf1 = tile_bias(params["fc1_b"])
    wf2 = bd(jnp.pad(jnp.transpose(params["fc2_w"], (1, 0)), ((0, 0), (0, NCp - NC))))
    bf2 = tile_bias(jnp.pad(params["fc2_b"], (0, NCp - NC)))
    p = params["gem_p"].reshape(1).astype(f32)

    kernel = functools.partial(_gemcnn_kernel, HW=HW, eps=eps)

    out = pl.pallas_call(
        kernel,
        out_shape=jax.ShapeDtypeStruct((nb, 1, Bt * NCp), f32),
        grid=(nb,),
        in_specs=[
            pl.BlockSpec((1, HW, Bt * K), lambda i: (i, 0, 0)),
            pl.BlockSpec((Bt * K, Bt * OC1), lambda i: (0, 0)),      # resident
            pl.BlockSpec((1, Bt * OC1), lambda i: (0, 0)),
            pl.BlockSpec(memory_space=pltpu.MemorySpace.SMEM),       # GeM p scalar
            pl.BlockSpec((Bt * OC1, Bt * OC2), lambda i: (0, 0)),
            pl.BlockSpec((1, Bt * OC2), lambda i: (0, 0)),
            pl.BlockSpec((Bt * OC2, Bt * NH), lambda i: (0, 0)),
            pl.BlockSpec((1, Bt * NH), lambda i: (0, 0)),
            pl.BlockSpec((Bt * NH, Bt * NCp), lambda i: (0, 0)),
            pl.BlockSpec((1, Bt * NCp), lambda i: (0, 0)),
        ],
        out_specs=pl.BlockSpec((1, 1, Bt * NCp), lambda i: (i, 0, 0)),
        compiler_params=pltpu.CompilerParams(dimension_semantics=("parallel",)),
    )(patches, w1, b1, p, w2, b2, wf1, bf1, wf2, bf2)

    # unpack lane-packed, class-padded logits -> [B, NC]
    return out.reshape(Bpad, NCp)[:B, :NC]


# ----------------------------- pure-JAX reference --------------------------- #
def _gem_pool_ref(y, p, eps):
    return jnp.mean(jnp.maximum(y, eps) ** p, axis=(2, 3), keepdims=True) ** (1.0 / p)


def gemcnn_reference(x, params, *, eps=1e-6):
    p = params["gem_p"][0]
    y = lax.conv_general_dilated(
        x, params["conv1_w"], (1, 1), ((1, 1), (1, 1)),
        dimension_numbers=("NCHW", "OIHW", "NCHW")) + params["conv1_b"].reshape(1, -1, 1, 1)
    y = jnp.maximum(y, 0.0)
    y = _gem_pool_ref(y, p, eps)
    y = lax.conv_general_dilated(
        y, params["conv2_w"], (1, 1), ((1, 1), (1, 1)),
        dimension_numbers=("NCHW", "OIHW", "NCHW")) + params["conv2_b"].reshape(1, -1, 1, 1)
    y = jnp.maximum(y, 0.0)
    y = _gem_pool_ref(y, p, eps)
    y = y.reshape(y.shape[0], -1)
    y = jnp.maximum(y @ params["fc1_w"].T + params["fc1_b"], 0.0)
    y = y @ params["fc2_w"].T + params["fc2_b"]     # dropout = identity at inference
    return y


# ----------------------------------- Demo ----------------------------------- #
if __name__ == "__main__":
    # GeMCNN config: input_channels=3, num_classes=10 (conv1: 3->32, conv2: 32->64,
    # fc1: 64->128, fc2: 128->10), CIFAR-like 32x32 spatial input, batch=2.
    B, C, H, W = 2, 3, 32, 32
    OC1, OC2, NH, NC = 32, 64, 128, 10

    key = jax.random.PRNGKey(0)
    ks = jax.random.split(key, 9)
    x = jax.random.normal(ks[0], (B, C, H, W), dtype=jnp.float32)
    params = {
        "conv1_w": 0.1 * jax.random.normal(ks[1], (OC1, C, 3, 3), dtype=jnp.float32),
        "conv1_b": 0.1 * jax.random.normal(ks[2], (OC1,), dtype=jnp.float32),
        "conv2_w": 0.1 * jax.random.normal(ks[3], (OC2, OC1, 3, 3), dtype=jnp.float32),
        "conv2_b": 0.1 * jax.random.normal(ks[4], (OC2,), dtype=jnp.float32),
        "fc1_w": 0.1 * jax.random.normal(ks[5], (NH, OC2), dtype=jnp.float32),
        "fc1_b": 0.1 * jax.random.normal(ks[6], (NH,), dtype=jnp.float32),
        "fc2_w": 0.1 * jax.random.normal(ks[7], (NC, NH), dtype=jnp.float32),
        "fc2_b": 0.1 * jax.random.normal(ks[8], (NC,), dtype=jnp.float32),
        "gem_p": jnp.array([3.0], dtype=jnp.float32),   # GeMPooling init p=3.0
    }

    fwd = jax.jit(gemcnn_forward)
    out = fwd(x, params)
    jax.block_until_ready(out)

    ref = gemcnn_reference(x, params)
    assert out.shape == (B, NC), out.shape
    max_err = float(jnp.max(jnp.abs(out - ref)))
    assert jnp.allclose(out, ref, atol=1e-3, rtol=1e-3), max_err
    print("KERNEL_OK")
</pallas_src>

<mosaic_0001>
module attributes {stable_mosaic.version = 11 : i64} {
  func.func @_gemcnn_kernel(%arg0: i32, %arg1: memref<1x1024x27xf32, #tpu.memory_space<vmem>>, %arg2: memref<27x32xf32, #tpu.memory_space<vmem>>, %arg3: memref<1x32xf32, #tpu.memory_space<vmem>>, %arg4: memref<1xf32, #tpu.memory_space<smem>>, %arg5: memref<32x64xf32, #tpu.memory_space<vmem>>, %arg6: memref<1x64xf32, #tpu.memory_space<vmem>>, %arg7: memref<64x128xf32, #tpu.memory_space<vmem>>, %arg8: memref<1x128xf32, #tpu.memory_space<vmem>>, %arg9: memref<128x32xf32, #tpu.memory_space<vmem>>, %arg10: memref<1x32xf32, #tpu.memory_space<vmem>>, %arg11: memref<1x1x32xf32, #tpu.memory_space<vmem>>) attributes {dimension_semantics = [#tpu.dimension_semantics<parallel>], iteration_bounds = array<i64: 2>, scalar_prefetch = 0 : i64, scratch_operands = 0 : i64, tpu.core_type = #tpu.core_type<tc>, window_params = [{transform_indices = @transform_0, window_bounds = array<i64: 1, 1024, 27>}, {pipeline_mode = #tpu.pipeline_mode<synchronous>, transform_indices = @transform_1, window_bounds = array<i64: 27, 32>}, {pipeline_mode = #tpu.pipeline_mode<synchronous>, transform_indices = @transform_2, window_bounds = array<i64: 1, 32>}, {transform_indices = @transform_3, window_bounds = array<i64: 1>}, {pipeline_mode = #tpu.pipeline_mode<synchronous>, transform_indices = @transform_4, window_bounds = array<i64: 32, 64>}, {pipeline_mode = #tpu.pipeline_mode<synchronous>, transform_indices = @transform_5, window_bounds = array<i64: 1, 64>}, {pipeline_mode = #tpu.pipeline_mode<synchronous>, transform_indices = @transform_6, window_bounds = array<i64: 64, 128>}, {pipeline_mode = #tpu.pipeline_mode<synchronous>, transform_indices = @transform_7, window_bounds = array<i64: 1, 128>}, {pipeline_mode = #tpu.pipeline_mode<synchronous>, transform_indices = @transform_8, window_bounds = array<i64: 128, 32>}, {pipeline_mode = #tpu.pipeline_mode<synchronous>, transform_indices = @transform_9, window_bounds = array<i64: 1, 32>}, {transform_indices = @transform_10, window_bounds = array<i64: 1, 1, 32>}]} {
    %c0 = arith.constant 0 : index
    %c0_0 = arith.constant 0 : index
    %c0_1 = arith.constant 0 : index
    %0 = vector.load %arg1[%c0, %c0_0, %c0_1] : memref<1x1024x27xf32, #tpu.memory_space<vmem>>, vector<1x1024x27xf32>
    %1 = vector.shape_cast %0 : vector<1x1024x27xf32> to vector<1024x27xf32>
    %c0_2 = arith.constant 0 : index
    %2 = memref.load %arg4[%c0_2] : memref<1xf32, #tpu.memory_space<smem>>
    %c0_3 = arith.constant 0 : index
    %c0_4 = arith.constant 0 : index
    %3 = vector.load %arg2[%c0_3, %c0_4] : memref<27x32xf32, #tpu.memory_space<vmem>>, vector<27x32xf32>
    %cst = arith.constant dense<0.000000e+00> : vector<1024x32xf32>
    %4 = tpu.matmul %1, %3, %cst {dimension_numbers = #tpu.dot_dimension_numbers<[1], [0], [0], [1], [0, 0, 1, 1], [], []>} : vector<1024x27xf32>, vector<27x32xf32>, vector<1024x32xf32> -> vector<1024x32xf32>
    %c0_5 = arith.constant 0 : index
    %c0_6 = arith.constant 0 : index
    %5 = vector.load %arg3[%c0_5, %c0_6] : memref<1x32xf32, #tpu.memory_space<vmem>>, vector<1x32xf32>
    %6 = vector.broadcast %5 : vector<1x32xf32> to vector<1024x32xf32>
    %7 = arith.addf %4, %6 : vector<1024x32xf32>
    %cst_7 = arith.constant 9.99999997E-7 : f32
    %8 = vector.broadcast %cst_7 : f32 to vector<1024x32xf32>
    %9 = arith.maximumf %7, %8 : vector<1024x32xf32>
    %10 = math.log %9 : vector<1024x32xf32>
    %11 = vector.broadcast %2 : f32 to vector<1024x32xf32>
    %12 = arith.mulf %11, %10 : vector<1024x32xf32>
    %13 = math.exp %12 : vector<1024x32xf32>
    %cst_8 = arith.constant 1.000000e+00 : f32
    %14 = vector.broadcast %cst_8 : f32 to vector<1x1024xf32>
    %cst_9 = arith.constant dense<0.000000e+00> : vector<1x32xf32>
    %15 = tpu.matmul %14, %13, %cst_9 {dimension_numbers = #tpu.dot_dimension_numbers<[1], [0], [0], [1], [0, 0, 1, 1], [], []>} : vector<1x1024xf32>, vector<1024x32xf32>, vector<1x32xf32> -> vector<1x32xf32>
    %cst_10 = arith.constant 9.765625E-4 : f32
    %16 = vector.broadcast %cst_10 : f32 to vector<1x32xf32>
    %17 = arith.mulf %15, %16 : vector<1x32xf32>
    %18 = math.log %17 : vector<1x32xf32>
    %19 = vector.broadcast %2 : f32 to vector<1x32xf32>
    %20 = arith.divf %18, %19 : vector<1x32xf32>
    %21 = math.exp %20 : vector<1x32xf32>
    %c0_11 = arith.constant 0 : index
    %c0_12 = arith.constant 0 : index
    %22 = vector.load %arg5[%c0_11, %c0_12] : memref<32x64xf32, #tpu.memory_space<vmem>>, vector<32x64xf32>
    %cst_13 = arith.constant dense<0.000000e+00> : vector<1x64xf32>
    %23 = tpu.matmul %21, %22, %cst_13 {dimension_numbers = #tpu.dot_dimension_numbers<[1], [0], [0], [1], [0, 0, 1, 1], [], []>} : vector<1x32xf32>, vector<32x64xf32>, vector<1x64xf32> -> vector<1x64xf32>
    %c0_14 = arith.constant 0 : index
    %c0_15 = arith.constant 0 : index
    %24 = vector.load %arg6[%c0_14, %c0_15] : memref<1x64xf32, #tpu.memory_space<vmem>>, vector<1x64xf32>
    %25 = arith.addf %23, %24 : vector<1x64xf32>
    %cst_16 = arith.constant 9.99999997E-7 : f32
    %26 = vector.broadcast %cst_16 : f32 to vector<1x64xf32>
    %27 = arith.maximumf %25, %26 : vector<1x64xf32>
    %c0_17 = arith.constant 0 : index
    %c0_18 = arith.constant 0 : index
    %28 = vector.load %arg7[%c0_17, %c0_18] : memref<64x128xf32, #tpu.memory_space<vmem>>, vector<64x128xf32>
    %cst_19 = arith.constant dense<0.000000e+00> : vector<1x128xf32>
    %29 = tpu.matmul %27, %28, %cst_19 {dimension_numbers = #tpu.dot_dimension_numbers<[1], [0], [0], [1], [0, 0, 1, 1], [], []>} : vector<1x64xf32>, vector<64x128xf32>, vector<1x128xf32> -> vector<1x128xf32>
    %c0_20 = arith.constant 0 : index
    %c0_21 = arith.constant 0 : index
    %30 = vector.load %arg8[%c0_20, %c0_21] : memref<1x128xf32, #tpu.memory_space<vmem>>, vector<1x128xf32>
    %31 = arith.addf %29, %30 : vector<1x128xf32>
    %cst_22 = arith.constant 0.000000e+00 : f32
    %32 = vector.broadcast %cst_22 : f32 to vector<1x128xf32>
    %33 = arith.maximumf %31, %32 : vector<1x128xf32>
    %c0_23 = arith.constant 0 : index
    %c0_24 = arith.constant 0 : index
    %34 = vector.load %arg9[%c0_23, %c0_24] : memref<128x32xf32, #tpu.memory_space<vmem>>, vector<128x32xf32>
    %cst_25 = arith.constant dense<0.000000e+00> : vector<1x32xf32>
    %35 = tpu.matmul %33, %34, %cst_25 {dimension_numbers = #tpu.dot_dimension_numbers<[1], [0], [0], [1], [0, 0, 1, 1], [], []>} : vector<1x128xf32>, vector<128x32xf32>, vector<1x32xf32> -> vector<1x32xf32>
    %c0_26 = arith.constant 0 : index
    %c0_27 = arith.constant 0 : index
    %36 = vector.load %arg10[%c0_26, %c0_27] : memref<1x32xf32, #tpu.memory_space<vmem>>, vector<1x32xf32>
    %37 = arith.addf %35, %36 : vector<1x32xf32>
    %c0_28 = arith.constant 0 : index
    %c0_29 = arith.constant 0 : index
    %c0_30 = arith.constant 0 : index
    %38 = vector.load %arg11[%c0_28, %c0_29, %c0_30] : memref<1x1x32xf32, #tpu.memory_space<vmem>>, vector<1x1x32xf32>
    %39 = vector.shape_cast %38 : vector<1x1x32xf32> to vector<1x32xf32>
    %40 = vector.shape_cast %37 : vector<1x32xf32> to vector<1x1x32xf32>
    tpu.vector_store %arg11[%c0_28, %c0_29, %c0_30], %40 {strides = array<i32>} : memref<1x1x32xf32, #tpu.memory_space<vmem>>, vector<1x1x32xf32>,
    return
  }
  func.func @transform_0(%arg0: i32) -> (i32, i32, i32) {
    %c0_i32 = arith.constant 0 : i32
    %c0_i32_0 = arith.constant 0 : i32
    %c0_i32_1 = arith.constant 0 : i32
    return %arg0, %c0_i32, %c0_i32_0 : i32, i32, i32
  }
  func.func @transform_1(%arg0: i32) -> (i32, i32) {
    %c0_i32 = arith.constant 0 : i32
    %c0_i32_0 = arith.constant 0 : i32
    %c0_i32_1 = arith.constant 0 : i32
    return %c0_i32, %c0_i32_0 : i32, i32
  }
  func.func @transform_2(%arg0: i32) -> (i32, i32) {
    %c0_i32 = arith.constant 0 : i32
    %c0_i32_0 = arith.constant 0 : i32
    %c0_i32_1 = arith.constant 0 : i32
    return %c0_i32, %c0_i32_0 : i32, i32
  }
  func.func @transform_3(%arg0: i32) -> i32 {
    %c0_i32 = arith.constant 0 : i32
    %c0_i32_0 = arith.constant 0 : i32
    return %c0_i32 : i32
  }
  func.func @transform_4(%arg0: i32) -> (i32, i32) {
    %c0_i32 = arith.constant 0 : i32
    %c0_i32_0 = arith.constant 0 : i32
    %c0_i32_1 = arith.constant 0 : i32
    return %c0_i32, %c0_i32_0 : i32, i32
  }
  func.func @transform_5(%arg0: i32) -> (i32, i32) {
    %c0_i32 = arith.constant 0 : i32
    %c0_i32_0 = arith.constant 0 : i32
    %c0_i32_1 = arith.constant 0 : i32
    return %c0_i32, %c0_i32_0 : i32, i32
  }
  func.func @transform_6(%arg0: i32) -> (i32, i32) {
    %c0_i32 = arith.constant 0 : i32
    %c0_i32_0 = arith.constant 0 : i32
    %c0_i32_1 = arith.constant 0 : i32
    return %c0_i32, %c0_i32_0 : i32, i32
  }
  func.func @transform_7(%arg0: i32) -> (i32, i32) {
    %c0_i32 = arith.constant 0 : i32
    %c0_i32_0 = arith.constant 0 : i32
    %c0_i32_1 = arith.constant 0 : i32
    return %c0_i32, %c0_i32_0 : i32, i32
  }
  func.func @transform_8(%arg0: i32) -> (i32, i32) {
    %c0_i32 = arith.constant 0 : i32
    %c0_i32_0 = arith.constant 0 : i32
    %c0_i32_1 = arith.constant 0 : i32
    return %c0_i32, %c0_i32_0 : i32, i32
  }
  func.func @transform_9(%arg0: i32) -> (i32, i32) {
    %c0_i32 = arith.constant 0 : i32
    %c0_i32_0 = arith.constant 0 : i32
    %c0_i32_1 = arith.constant 0 : i32
    return %c0_i32, %c0_i32_0 : i32, i32
  }
  func.func @transform_10(%arg0: i32) -> (i32, i32, i32) {
    %c0_i32 = arith.constant 0 : i32
    %c0_i32_0 = arith.constant 0 : i32
    %c0_i32_1 = arith.constant 0 : i32
    return %arg0, %c0_i32, %c0_i32_0 : i32, i32, i32
  }
}

</mosaic_0001>

<llo_original>
// kernel: gemcnn_forward.1
$region0: #{gemcnn_forward.1}
  #allocation0 [shape = 'u32[]', space=smem, size = 0x4, offset = 0x4, fixed_abs, tag = 'smem constant byte address 0x4 - core index']
  #allocation1 [shape = 'u32[144,128]{1,0:T(1,128)}', space=vmem, size = 0x12000, scoped, tag = 'internal scratch']
  #allocation2 [shape = 'f32[1]{0:T(128)S(6)}', space=smem, size = 0x200, scoped, tag = 'scoped memory for gemcnn_forward.1']
  %s0 = inlined_call_operand.vmem [shape: f32[2,1024,27], index: 0, kind: input, shape index: {}]
  %s1 = inlined_call_operand.vmem [shape: f32[27,32], index: 1, kind: input, shape index: {}]
  %s2 = inlined_call_operand.vmem [shape: f32[1,32], index: 2, kind: input, shape index: {}]
  %s3 = inlined_call_operand.<no memory space> [shape: f32[1], index: 3, kind: input, shape index: {}]
  %s4 = inlined_call_operand.vmem [shape: f32[32,64], index: 4, kind: input, shape index: {}]
  %s5 = inlined_call_operand.vmem [shape: f32[1,64], index: 5, kind: input, shape index: {}]
  %s6 = inlined_call_operand.vmem [shape: f32[64,128], index: 6, kind: input, shape index: {}]
  %s7 = inlined_call_operand.vmem [shape: f32[1,128], index: 7, kind: input, shape index: {}]
  %s8 = inlined_call_operand.vmem [shape: f32[128,32], index: 8, kind: input, shape index: {}]
  %s9 = inlined_call_operand.vmem [shape: f32[1,32], index: 9, kind: input, shape index: {}]
  %s10 = inlined_call_operand.hbm [shape: f32[2,1,32], index: 10, kind: output, shape index: {}]
  %s11 = sld [smem:[#allocation0]]
  $region73: #{gemcnn_forward.1} parent=0
    _
  %s13 = ssub.s32 1, %s11
  %s14 = scalar_select 0, %s13, %s11
  %15 = sst [smem:[#allocation2]] %s3
  $region1: #{gemcnn_forward.1} parent=0
    #allocation3 [shape = 'u8[1024]{0}', space=vmem, size = 0x400, scoped, tag = 'output window, operand 0']
    #allocation4 [shape = 's32[2]{0}', space=sflag, size = 0x8, scoped, tag = 'scoped memory for gemcnn_forward.1']
    %16 = vsyncpa [#allocation4], 0
    %s17 = scalar_lea.sflag [#allocation4], 1
    %18 = vsyncpa %s17, 0
    loop: start=0, step=1, limit=4
    $region2: #{gemcnn_forward.1} parent=1 // loop_pre_header
      _
    $region3: #{gemcnn_forward.1} parent=1 // loop_header
      %s20 = sphi 0, %s24
      %p21 = scmp.ge.s32.totalorder %s20, 4
      %s30 = sphi 0, %s32
      %s33 = sphi 0, %s30
      %s34 = sphi 0, %s33
      %s50 = sphi 0, %s34
      %s54 = sphi 0, %s54
      %s56 = sphi 0, %s54
      %s57 = sphi 0, %s56
      %s71 = sphi 0, %s57
      %s75 = sphi 0, %s75
      %s77 = sphi 0, %s75
      %s78 = sphi 0, %s77
      %s92 = sphi 0, %s78
      %s96 = sphi 0, %s96
      %s98 = sphi 0, %s96
      %s99 = sphi 0, %s98
      %s113 = sphi 0, %s99
      %s117 = sphi 0, %s117
      %s119 = sphi 0, %s117
      %s120 = sphi 0, %s119
      %s134 = sphi 0, %s120
      %s138 = sphi 0, %s138
      %s140 = sphi 0, %s138
      %s141 = sphi 0, %s140
      %s155 = sphi 0, %s141
      %s159 = sphi 0, %s159
      %s161 = sphi 0, %s159
      %s162 = sphi 0, %s161
      %s176 = sphi 0, %s162
      %s180 = sphi 0, %s180
      %s182 = sphi 0, %s180
      %s183 = sphi 0, %s182
      %s197 = sphi 0, %s183
      %s201 = sphi 0, %s201
      %s203 = sphi 0, %s201
      %s204 = sphi 0, %s203
      %s218 = sphi 0, %s204
      %s222 = sphi 0, %s222
      %s224 = sphi 0, %s222
      %s225 = sphi 0, %s224
      %s239 = sphi 0, %s225
      %s245 = sphi 0, %s247
      %s248 = sphi 0, %s245
      %s249 = sphi 0, %s248
      %s265 = sphi 0, %s249
    $region4: #{gemcnn_forward.1} parent=1 // loop_header_branch
      %23 = sbr.rel (%p21) target = $region8
    $region5: #{gemcnn_forward.1} parent=1 // loop_body
      %s25 = ssub.s32 %s20, 1
      %s26 = ssub.s32 %s20, 2
      %s27 = sadd.s32 %s20, 1
      %s28 = ssub.s32 %s20, %s27
      %p29 = scmp.eq.s32.totalorder %s28, 0
      %s31 = sadd.s32 %s30, 1
      %s32 = scalar_select %p29, %s30, %s31
      %p35 = pneg %p29
      %p36 = scmp.eq.s32.totalorder %s20, 1
      %p37 = por %p35, %p36
      %p38 = scmp.ne.s32.totalorder %s30, %s33
      %p39 = scmp.eq.s32.totalorder %s20, 0
      %p40 = por %p38, %p39
      %p41 = scmp.ne.s32.totalorder %s30, %s33
      %p42 = scmp.eq.s32.totalorder %s25, 1
      %p43 = por %p41, %p42
      %p44 = scmp.ne.s32.totalorder %s33, %s34
      %p45 = scmp.eq.s32.totalorder %s25, 0
      %p46 = por %p44, %p45
      %p47 = scmp.ne.s32.totalorder %s33, %s34
      %p48 = scmp.eq.s32.totalorder %s26, 1
      %p49 = por %p47, %p48
      %p51 = scmp.ne.s32.totalorder %s34, %s50
      %p52 = scmp.eq.s32.totalorder %s26, 0
      %p53 = por %p51, %p52
      %s55 = sadd.s32 %s54, 1
      %p58 = scmp.eq.s32.totalorder %s20, 1
      %p59 = scmp.ne.s32.totalorder %s54, %s56
      %p60 = scmp.eq.s32.totalorder %s20, 0
      %p61 = por %p59, %p60
      %p62 = scmp.ne.s32.totalorder %s54, %s56
      %p63 = scmp.eq.s32.totalorder %s25, 1
      %p64 = por %p62, %p63
      %p65 = scmp.ne.s32.totalorder %s56, %s57
      %p66 = scmp.eq.s32.totalorder %s25, 0
      %p67 = por %p65, %p66
      %p68 = scmp.ne.s32.totalorder %s56, %s57
      %p69 = scmp.eq.s32.totalorder %s26, 1
      %p70 = por %p68, %p69
      %p72 = scmp.ne.s32.totalorder %s57, %s71
      %p73 = scmp.eq.s32.totalorder %s26, 0
      %p74 = por %p72, %p73
      %s76 = sadd.s32 %s75, 1
      %p79 = scmp.eq.s32.totalorder %s20, 1
      %p80 = scmp.ne.s32.totalorder %s75, %s77
      %p81 = scmp.eq.s32.totalorder %s20, 0
      %p82 = por %p80, %p81
      %p83 = scmp.ne.s32.totalorder %s75, %s77
      %p84 = scmp.eq.s32.totalorder %s25, 1
      %p85 = por %p83, %p84
      %p86 = scmp.ne.s32.totalorder %s77, %s78
      %p87 = scmp.eq.s32.totalorder %s25, 0
      %p88 = por %p86, %p87
      %p89 = scmp.ne.s32.totalorder %s77, %s78
      %p90 = scmp.eq.s32.totalorder %s26, 1
      %p91 = por %p89, %p90
      %p93 = scmp.ne.s32.totalorder %s78, %s92
      %p94 = scmp.eq.s32.totalorder %s26, 0
      %p95 = por %p93, %p94
      %s97 = sadd.s32 %s96, 1
      %p100 = scmp.eq.s32.totalorder %s20, 1
      %p101 = scmp.ne.s32.totalorder %s96, %s98
      %p102 = scmp.eq.s32.totalorder %s20, 0
      %p103 = por %p101, %p102
      %p104 = scmp.ne.s32.totalorder %s96, %s98
      %p105 = scmp.eq.s32.totalorder %s25, 1
      %p106 = por %p104, %p105
      %p107 = scmp.ne.s32.totalorder %s98, %s99
      %p108 = scmp.eq.s32.totalorder %s25, 0
      %p109 = por %p107, %p108
      %p110 = scmp.ne.s32.totalorder %s98, %s99
      %p111 = scmp.eq.s32.totalorder %s26, 1
      %p112 = por %p110, %p111
      %p114 = scmp.ne.s32.totalorder %s99, %s113
      %p115 = scmp.eq.s32.totalorder %s26, 0
      %p116 = por %p114, %p115
      %s118 = sadd.s32 %s117, 1
      %p121 = scmp.eq.s32.totalorder %s20, 1
      %p122 = scmp.ne.s32.totalorder %s117, %s119
      %p123 = scmp.eq.s32.totalorder %s20, 0
      %p124 = por %p122, %p123
      %p125 = scmp.ne.s32.totalorder %s117, %s119
      %p126 = scmp.eq.s32.totalorder %s25, 1
      %p127 = por %p125, %p126
      %p128 = scmp.ne.s32.totalorder %s119, %s120
      %p129 = scmp.eq.s32.totalorder %s25, 0
      %p130 = por %p128, %p129
      %p131 = scmp.ne.s32.totalorder %s119, %s120
      %p132 = scmp.eq.s32.totalorder %s26, 1
      %p133 = por %p131, %p132
      %p135 = scmp.ne.s32.totalorder %s120, %s134
      %p136 = scmp.eq.s32.totalorder %s26, 0
      %p137 = por %p135, %p136
      %s139 = sadd.s32 %s138, 1
      %p142 = scmp.eq.s32.totalorder %s20, 1
      %p143 = scmp.ne.s32.totalorder %s138, %s140
      %p144 = scmp.eq.s32.totalorder %s20, 0
      %p145 = por %p143, %p144
      %p146 = scmp.ne.s32.totalorder %s138, %s140
      %p147 = scmp.eq.s32.totalorder %s25, 1
      %p148 = por %p146, %p147
      %p149 = scmp.ne.s32.totalorder %s140, %s141
      %p150 = scmp.eq.s32.totalorder %s25, 0
      %p151 = por %p149, %p150
      %p152 = scmp.ne.s32.totalorder %s140, %s141
      %p153 = scmp.eq.s32.totalorder %s26, 1
      %p154 = por %p152, %p153
      %p156 = scmp.ne.s32.totalorder %s141, %s155
      %p157 = scmp.eq.s32.totalorder %s26, 0
      %p158 = por %p156, %p157
      %s160 = sadd.s32 %s159, 1
      %p163 = scmp.eq.s32.totalorder %s20, 1
      %p164 = scmp.ne.s32.totalorder %s159, %s161
      %p165 = scmp.eq.s32.totalorder %s20, 0
      %p166 = por %p164, %p165
      %p167 = scmp.ne.s32.totalorder %s159, %s161
      %p168 = scmp.eq.s32.totalorder %s25, 1
      %p169 = por %p167, %p168
      %p170 = scmp.ne.s32.totalorder %s161, %s162
      %p171 = scmp.eq.s32.totalorder %s25, 0
      %p172 = por %p170, %p171
      %p173 = scmp.ne.s32.totalorder %s161, %s162
      %p174 = scmp.eq.s32.totalorder %s26, 1
      %p175 = por %p173, %p174
      %p177 = scmp.ne.s32.totalorder %s162, %s176
      %p178 = scmp.eq.s32.totalorder %s26, 0
      %p179 = por %p177, %p178
      %s181 = sadd.s32 %s180, 1
      %p184 = scmp.eq.s32.totalorder %s20, 1
      %p185 = scmp.ne.s32.totalorder %s180, %s182
      %p186 = scmp.eq.s32.totalorder %s20, 0
      %p187 = por %p185, %p186
      %p188 = scmp.ne.s32.totalorder %s180, %s182
      %p189 = scmp.eq.s32.totalorder %s25, 1
      %p190 = por %p188, %p189
      %p191 = scmp.ne.s32.totalorder %s182, %s183
      %p192 = scmp.eq.s32.totalorder %s25, 0
      %p193 = por %p191, %p192
      %p194 = scmp.ne.s32.totalorder %s182, %s183
      %p195 = scmp.eq.s32.totalorder %s26, 1
      %p196 = por %p194, %p195
      %p198 = scmp.ne.s32.totalorder %s183, %s197
      %p199 = scmp.eq.s32.totalorder %s26, 0
      %p200 = por %p198, %p199
      %s202 = sadd.s32 %s201, 1
      %p205 = scmp.eq.s32.totalorder %s20, 1
      %p206 = scmp.ne.s32.totalorder %s201, %s203
      %p207 = scmp.eq.s32.totalorder %s20, 0
      %p208 = por %p206, %p207
      %p209 = scmp.ne.s32.totalorder %s201, %s203
      %p210 = scmp.eq.s32.totalorder %s25, 1
      %p211 = por %p209, %p210
      %p212 = scmp.ne.s32.totalorder %s203, %s204
      %p213 = scmp.eq.s32.totalorder %s25, 0
      %p214 = por %p212, %p213
      %p215 = scmp.ne.s32.totalorder %s203, %s204
      %p216 = scmp.eq.s32.totalorder %s26, 1
      %p217 = por %p215, %p216
      %p219 = scmp.ne.s32.totalorder %s204, %s218
      %p220 = scmp.eq.s32.totalorder %s26, 0
      %p221 = por %p219, %p220
      %s223 = sadd.s32 %s222, 1
      %p226 = scmp.eq.s32.totalorder %s20, 1
      %p227 = scmp.ne.s32.totalorder %s222, %s224
      %p228 = scmp.eq.s32.totalorder %s20, 0
      %p229 = por %p227, %p228
      %p230 = scmp.ne.s32.totalorder %s222, %s224
      %p231 = scmp.eq.s32.totalorder %s25, 1
      %p232 = por %p230, %p231
      %p233 = scmp.ne.s32.totalorder %s224, %s225
      %p234 = scmp.eq.s32.totalorder %s25, 0
      %p235 = por %p233, %p234
      %p236 = scmp.ne.s32.totalorder %s224, %s225
      %p237 = scmp.eq.s32.totalorder %s26, 1
      %p238 = por %p236, %p237
      %p240 = scmp.ne.s32.totalorder %s225, %s239
      %p241 = scmp.eq.s32.totalorder %s26, 0
      %p242 = por %p240, %p241
      %s243 = ssub.s32 %s20, %s27
      %p244 = scmp.eq.s32.totalorder %s243, 0
      %s246 = sadd.s32 %s245, 1
      %s247 = scalar_select %p244, %s245, %s246
      %p250 = pneg %p244
      %p251 = scmp.eq.s32.totalorder %s20, 1
      %p252 = por %p250, %p251
      %p253 = scmp.ne.s32.totalorder %s245, %s248
      %p254 = scmp.eq.s32.totalorder %s20, 0
      %p255 = por %p253, %p254
      %p256 = scmp.ne.s32.totalorder %s245, %s248
      %p257 = scmp.eq.s32.totalorder %s25, 1
      %p258 = por %p256, %p257
      %p259 = scmp.ne.s32.totalorder %s248, %s249
      %p260 = scmp.eq.s32.totalorder %s25, 0
      %p261 = por %p259, %p260
      %p262 = scmp.ne.s32.totalorder %s248, %s249
      %p263 = scmp.eq.s32.totalorder %s26, 1
      %p264 = por %p262, %p263
      %p266 = scmp.ne.s32.totalorder %s249, %s265
      %p267 = scmp.eq.s32.totalorder %s26, 0
      %p268 = por %p266, %p267
      %p269 = scmp.le.s32.totalorder 1, %s20
      %p270 = scmp.lt.s32.totalorder %s20, 3
      %p271 = pnand %p269, %p270
      %p272 = pneg %p271
      // Predicated region
      $region9: #{gemcnn_forward.1} parent=5 // pred_check
        _
      $region10: #{gemcnn_forward.1} parent=5 // pred_check_branch
        %274 = sbr.rel (%p271) target = $region12
      $region11: #{gemcnn_forward.1} parent=5 // pred_region
        %s275 = ssub.s32 %s20, 1
        // Predicated region
        $region13: #{gemcnn_forward.1} parent=11 // pred_check
          %p276 = pneg %p67
        $region14: #{gemcnn_forward.1} parent=11 // pred_check_branch
          %278 = sbr.rel (%p276) target = $region16
        $region15: #{gemcnn_forward.1} parent=11 // pred_region
          _
        $region16: #{gemcnn_forward.1} parent=11 // pred_fallthru
          _
        // Predicated region
        $region17: #{gemcnn_forward.1} parent=11 // pred_check
          %p279 = pneg %p88
        $region18: #{gemcnn_forward.1} parent=11 // pred_check_branch
          %281 = sbr.rel (%p279) target = $region20
        $region19: #{gemcnn_forward.1} parent=11 // pred_region
          _
        $region20: #{gemcnn_forward.1} parent=11 // pred_fallthru
          _
        // Predicated region
        $region21: #{gemcnn_forward.1} parent=11 // pred_check
          %p282 = pneg %p109
        $region22: #{gemcnn_forward.1} parent=11 // pred_check_branch
          %284 = sbr.rel (%p282) target = $region24
        $region23: #{gemcnn_forward.1} parent=11 // pred_region
          _
        $region24: #{gemcnn_forward.1} parent=11 // pred_fallthru
          _
        // Predicated region
        $region25: #{gemcnn_forward.1} parent=11 // pred_check
          %p285 = pneg %p130
        $region26: #{gemcnn_forward.1} parent=11 // pred_check_branch
          %287 = sbr.rel (%p285) target = $region28
        $region27: #{gemcnn_forward.1} parent=11 // pred_region
          _
        $region28: #{gemcnn_forward.1} parent=11 // pred_fallthru
          _
        // Predicated region
        $region29: #{gemcnn_forward.1} parent=11 // pred_check
          %p288 = pneg %p151
        $region30: #{gemcnn_forward.1} parent=11 // pred_check_branch
          %290 = sbr.rel (%p288) target = $region32
        $region31: #{gemcnn_forward.1} parent=11 // pred_region
          _
        $region32: #{gemcnn_forward.1} parent=11 // pred_fallthru
          _
        // Predicated region
        $region33: #{gemcnn_forward.1} parent=11 // pred_check
          %p291 = pneg %p172
        $region34: #{gemcnn_forward.1} parent=11 // pred_check_branch
          %293 = sbr.rel (%p291) target = $region36
        $region35: #{gemcnn_forward.1} parent=11 // pred_region
          _
        $region36: #{gemcnn_forward.1} parent=11 // pred_fallthru
          _
        // Predicated region
        $region37: #{gemcnn_forward.1} parent=11 // pred_check
          %p294 = pneg %p193
        $region38: #{gemcnn_forward.1} parent=11 // pred_check_branch
          %296 = sbr.rel (%p294) target = $region40
        $region39: #{gemcnn_forward.1} parent=11 // pred_region
          _
        $region40: #{gemcnn_forward.1} parent=11 // pred_fallthru
          _
        // Predicated region
        $region41: #{gemcnn_forward.1} parent=11 // pred_check
          %p297 = pneg %p214
        $region42: #{gemcnn_forward.1} parent=11 // pred_check_branch
          %299 = sbr.rel (%p297) target = $region44
        $region43: #{gemcnn_forward.1} parent=11 // pred_region
          _
        $region44: #{gemcnn_forward.1} parent=11 // pred_fallthru
          _
        // Predicated region
        $region45: #{gemcnn_forward.1} parent=11 // pred_check
          %p300 = pneg %p235
        $region46: #{gemcnn_forward.1} parent=11 // pred_check_branch
          %302 = sbr.rel (%p300) target = $region48
        $region47: #{gemcnn_forward.1} parent=11 // pred_region
          _
        $region48: #{gemcnn_forward.1} parent=11 // pred_fallthru
          _
      $region12: #{gemcnn_forward.1} parent=5 // pred_fallthru
        _
      %p303 = scmp.lt.s32.totalorder %s20, 2
      // Predicated region
      $region49: #{gemcnn_forward.1} parent=5 // pred_check
        %p304 = pneg %p303
      $region50: #{gemcnn_forward.1} parent=5 // pred_check_branch
        %306 = sbr.rel (%p304) target = $region52
      $region51: #{gemcnn_forward.1} parent=5 // pred_region
        // Predicated region
        $region53: #{gemcnn_forward.1} parent=51 // pred_check
          %p307 = pneg %p40
        $region54: #{gemcnn_forward.1} parent=51 // pred_check_branch
          %309 = sbr.rel (%p307) target = $region56
        $region55: #{gemcnn_forward.1} parent=51 // pred_region
          %p310 = scmp.lt.s32.totalorder %s20, 1
          %s311 = scalar_select %p310, %s20, 1
          %s312 = smul.addr %s311, 128
          %s313 = smul.addr %s312, 8
          %s314 = scalar_lea.vmem %s0, %s313
        $region56: #{gemcnn_forward.1} parent=51 // pred_fallthru
          _
      $region52: #{gemcnn_forward.1} parent=5 // pred_fallthru
        _
      %p315 = scmp.le.s32.totalorder 1, %s20
      %p316 = scmp.lt.s32.totalorder %s20, 3
      %p317 = pnand %p315, %p316
      %p318 = pneg %p317
      // Predicated region
      $region57: #{gemcnn_forward.1} parent=5 // pred_check
        _
      $region58: #{gemcnn_forward.1} parent=5 // pred_check_branch
        %320 = sbr.rel (%p317) target = $region60
      $region59: #{gemcnn_forward.1} parent=5 // pred_region
        %s321 = ssub.s32 %s20, 1
        %p322 = scmp.lt.s32.totalorder %s25, 1
        %s323 = scalar_select %p322, %s25, 1
        %s324 = smul.addr %s323, 128
        %s325 = smul.addr %s324, 8
        %s326 = scalar_lea.vmem %s0, %s325
        %p327 = pneg %p46
        %p328 = pneg %p43
        %p329 = pneg %p67
        %p330 = pneg %p64
        %p331 = pneg %p88
        %p332 = pneg %p85
        %p333 = pneg %p109
        %p334 = pneg %p106
        %p335 = pneg %p130
        %p336 = pneg %p127
        %p337 = pneg %p151
        %p338 = pneg %p148
        %p339 = pneg %p172
        %p340 = pneg %p169
        %p341 = pneg %p193
        %p342 = pneg %p190
        %p343 = pneg %p214
        %p344 = pneg %p211
        %p345 = pneg %p235
        %p346 = pneg %p232
        %p347 = pneg %p261
        %p348 = pneg %p258
        %s349 = sand.u32 %s248, 1
        %s350 = scalar_lea.sflag [#allocation4], %s349
        %s351 = sand.u32 %s248, 1
        %s352 = scalar_lea.vmem [#allocation3], %s351
        %p353 = scmp.lt.s32.totalorder %s25, 1
        %s354 = scalar_select %p353, %s25, 1
        %s355 = smul.addr %s354, 128
        %s356 = smul.addr %s355, 8
        %s357 = scalar_lea.vmem %s0, %s356
        %v358 = vld [vmem:[%s357] sm:$0xff]
        %v359 = vld [vmem:[%s357 + $0x8] sm:$0xff]
        %v360 = vld [vmem:[%s357 + $0x10] sm:$0xff]
        %v361 = vld [vmem:[%s357 + $0x18] sm:$0xff]
        %v362 = vld [vmem:[%s357 + $0x20] sm:$0xff]
        %v363 = vld [vmem:[%s357 + $0x28] sm:$0xff]
        %v364 = vld [vmem:[%s357 + $0x30] sm:$0xff]
        %v365 = vld [vmem:[%s357 + $0x38] sm:$0xff]
        %v366 = vld [vmem:[%s357 + $0x40] sm:$0xff]
        %v367 = vld [vmem:[%s357 + $0x48] sm:$0xff]
        %v368 = vld [vmem:[%s357 + $0x50] sm:$0xff]
        %v369 = vld [vmem:[%s357 + $0x58] sm:$0xff]
        %v370 = vld [vmem:[%s357 + $0x60] sm:$0xff]
        %v371 = vld [vmem:[%s357 + $0x68] sm:$0xff]
        %v372 = vld [vmem:[%s357 + $0x70] sm:$0xff]
        %v373 = vld [vmem:[%s357 + $0x78] sm:$0xff]
        %v374 = vld [vmem:[%s357 + $0x80] sm:$0xff]
        %v375 = vld [vmem:[%s357 + $0x88] sm:$0xff]
        %v376 = vld [vmem:[%s357 + $0x90] sm:$0xff]
        %v377 = vld [vmem:[%s357 + $0x98] sm:$0xff]
        %v378 = vld [vmem:[%s357 + $0xa0] sm:$0xff]
        %v379 = vld [vmem:[%s357 + $0xa8] sm:$0xff]
        %v380 = vld [vmem:[%s357 + $0xb0] sm:$0xff]
        %v381 = vld [vmem:[%s357 + $0xb8] sm:$0xff]
        %v382 = vld [vmem:[%s357 + $0xc0] sm:$0xff]
        %v383 = vld [vmem:[%s357 + $0xc8] sm:$0xff]
        %v384 = vld [vmem:[%s357 + $0xd0] sm:$0xff]
        %v385 = vld [vmem:[%s357 + $0xd8] sm:$0xff]
        %v386 = vld [vmem:[%s357 + $0xe0] sm:$0xff]
        %v387 = vld [vmem:[%s357 + $0xe8] sm:$0xff]
        %v388 = vld [vmem:[%s357 + $0xf0] sm:$0xff]
        %v389 = vld [vmem:[%s357 + $0xf8] sm:$0xff]
        %v390 = vld [vmem:[%s357 + $0x100] sm:$0xff]
        %v391 = vld [vmem:[%s357 + $0x108] sm:$0xff]
        %v392 = vld [vmem:[%s357 + $0x110] sm:$0xff]
        %v393 = vld [vmem:[%s357 + $0x118] sm:$0xff]
        %v394 = vld [vmem:[%s357 + $0x120] sm:$0xff]
        %v395 = vld [vmem:[%s357 + $0x128] sm:$0xff]
        %v396 = vld [vmem:[%s357 + $0x130] sm:$0xff]
        %v397 = vld [vmem:[%s357 + $0x138] sm:$0xff]
        %v398 = vld [vmem:[%s357 + $0x140] sm:$0xff]
        %v399 = vld [vmem:[%s357 + $0x148] sm:$0xff]
        %v400 = vld [vmem:[%s357 + $0x150] sm:$0xff]
        %v401 = vld [vmem:[%s357 + $0x158] sm:$0xff]
        %v402 = vld [vmem:[%s357 + $0x160] sm:$0xff]
        %v403 = vld [vmem:[%s357 + $0x168] sm:$0xff]
        %v404 = vld [vmem:[%s357 + $0x170] sm:$0xff]
        %v405 = vld [vmem:[%s357 + $0x178] sm:$0xff]
        %v406 = vld [vmem:[%s357 + $0x180] sm:$0xff]
        %v407 = vld [vmem:[%s357 + $0x188] sm:$0xff]
        %v408 = vld [vmem:[%s357 + $0x190] sm:$0xff]
        %v409 = vld [vmem:[%s357 + $0x198] sm:$0xff]
        %v410 = vld [vmem:[%s357 + $0x1a0] sm:$0xff]
        %v411 = vld [vmem:[%s357 + $0x1a8] sm:$0xff]
        %v412 = vld [vmem:[%s357 + $0x1b0] sm:$0xff]
        %v413 = vld [vmem:[%s357 + $0x1b8] sm:$0xff]
        %v414 = vld [vmem:[%s357 + $0x1c0] sm:$0xff]
        %v415 = vld [vmem:[%s357 + $0x1c8] sm:$0xff]
        %v416 = vld [vmem:[%s357 + $0x1d0] sm:$0xff]
        %v417 = vld [vmem:[%s357 + $0x1d8] sm:$0xff]
        %v418 = vld [vmem:[%s357 + $0x1e0] sm:$0xff]
        %v419 = vld [vmem:[%s357 + $0x1e8] sm:$0xff]
        %v420 = vld [vmem:[%s357 + $0x1f0] sm:$0xff]
        %v421 = vld [vmem:[%s357 + $0x1f8] sm:$0xff]
        %v422 = vld [vmem:[%s357 + $0x200] sm:$0xff]
        %v423 = vld [vmem:[%s357 + $0x208] sm:$0xff]
        %v424 = vld [vmem:[%s357 + $0x210] sm:$0xff]
        %v425 = vld [vmem:[%s357 + $0x218] sm:$0xff]
        %v426 = vld [vmem:[%s357 + $0x220] sm:$0xff]
        %v427 = vld [vmem:[%s357 + $0x228] sm:$0xff]
        %v428 = vld [vmem:[%s357 + $0x230] sm:$0xff]
        %v429 = vld [vmem:[%s357 + $0x238] sm:$0xff]
        %v430 = vld [vmem:[%s357 + $0x240] sm:$0xff]
        %v431 = vld [vmem:[%s357 + $0x248] sm:$0xff]
        %v432 = vld [vmem:[%s357 + $0x250] sm:$0xff]
        %v433 = vld [vmem:[%s357 + $0x258] sm:$0xff]
        %v434 = vld [vmem:[%s357 + $0x260] sm:$0xff]
        %v435 = vld [vmem:[%s357 + $0x268] sm:$0xff]
        %v436 = vld [vmem:[%s357 + $0x270] sm:$0xff]
        %v437 = vld [vmem:[%s357 + $0x278] sm:$0xff]
        %v438 = vld [vmem:[%s357 + $0x280] sm:$0xff]
        %v439 = vld [vmem:[%s357 + $0x288] sm:$0xff]
        %v440 = vld [vmem:[%s357 + $0x290] sm:$0xff]
        %v441 = vld [vmem:[%s357 + $0x298] sm:$0xff]
        %v442 = vld [vmem:[%s357 + $0x2a0] sm:$0xff]
        %v443 = vld [vmem:[%s357 + $0x2a8] sm:$0xff]
        %v444 = vld [vmem:[%s357 + $0x2b0] sm:$0xff]
        %v445 = vld [vmem:[%s357 + $0x2b8] sm:$0xff]
        %v446 = vld [vmem:[%s357 + $0x2c0] sm:$0xff]
        %v447 = vld [vmem:[%s357 + $0x2c8] sm:$0xff]
        %v448 = vld [vmem:[%s357 + $0x2d0] sm:$0xff]
        %v449 = vld [vmem:[%s357 + $0x2d8] sm:$0xff]
        %v450 = vld [vmem:[%s357 + $0x2e0] sm:$0xff]
        %v451 = vld [vmem:[%s357 + $0x2e8] sm:$0xff]
        %v452 = vld [vmem:[%s357 + $0x2f0] sm:$0xff]
        %v453 = vld [vmem:[%s357 + $0x2f8] sm:$0xff]
        %v454 = vld [vmem:[%s357 + $0x300] sm:$0xff]
        %v455 = vld [vmem:[%s357 + $0x308] sm:$0xff]
        %v456 = vld [vmem:[%s357 + $0x310] sm:$0xff]
        %v457 = vld [vmem:[%s357 + $0x318] sm:$0xff]
        %v458 = vld [vmem:[%s357 + $0x320] sm:$0xff]
        %v459 = vld [vmem:[%s357 + $0x328] sm:$0xff]
        %v460 = vld [vmem:[%s357 + $0x330] sm:$0xff]
        %v461 = vld [vmem:[%s357 + $0x338] sm:$0xff]
        %v462 = vld [vmem:[%s357 + $0x340] sm:$0xff]
        %v463 = vld [vmem:[%s357 + $0x348] sm:$0xff]
        %v464 = vld [vmem:[%s357 + $0x350] sm:$0xff]
        %v465 = vld [vmem:[%s357 + $0x358] sm:$0xff]
        %v466 = vld [vmem:[%s357 + $0x360] sm:$0xff]
        %v467 = vld [vmem:[%s357 + $0x368] sm:$0xff]
        %v468 = vld [vmem:[%s357 + $0x370] sm:$0xff]
        %v469 = vld [vmem:[%s357 + $0x378] sm:$0xff]
        %v470 = vld [vmem:[%s357 + $0x380] sm:$0xff]
        %v471 = vld [vmem:[%s357 + $0x388] sm:$0xff]
        %v472 = vld [vmem:[%s357 + $0x390] sm:$0xff]
        %v473 = vld [vmem:[%s357 + $0x398] sm:$0xff]
        %v474 = vld [vmem:[%s357 + $0x3a0] sm:$0xff]
        %v475 = vld [vmem:[%s357 + $0x3a8] sm:$0xff]
        %v476 = vld [vmem:[%s357 + $0x3b0] sm:$0xff]
        %v477 = vld [vmem:[%s357 + $0x3b8] sm:$0xff]
        %v478 = vld [vmem:[%s357 + $0x3c0] sm:$0xff]
        %v479 = vld [vmem:[%s357 + $0x3c8] sm:$0xff]
        %v480 = vld [vmem:[%s357 + $0x3d0] sm:$0xff]
        %v481 = vld [vmem:[%s357 + $0x3d8] sm:$0xff]
        %v482 = vld [vmem:[%s357 + $0x3e0] sm:$0xff]
        %v483 = vld [vmem:[%s357 + $0x3e8] sm:$0xff]
        %v484 = vld [vmem:[%s357 + $0x3f0] sm:$0xff]
        %v485 = vld [vmem:[%s357 + $0x3f8] sm:$0xff]
        %s486 = sld [smem:[#allocation2]]
        %v487 = vld [vmem:[%s1] sm:$0xff]
        %v488 = vld [vmem:[%s1 + $0x8] sm:$0xff]
        %v489 = vld [vmem:[%s1 + $0x10] sm:$0xff]
        %v490 = vld [vmem:[%s1 + $0x18] sm:$0x7]
        %v491 = vld [vmem:[%s2] sm:$0x1]
        %v493 = vlaneseq
        %v494 = vshrl.u32 %v493, 7
        %v495 = vsub.s32 0, %v494
        %v496 = vrot.slane %v491, %v495
        %vm498 = vcmask 220160
        %v500 = vsel %vm498, %v358, 0
        %v503 = vsel %vm498, %v359, 0
        %v506 = vsel %vm498, %v360, 0
        %v509 = vsel %vm498, %v361, 0
        %v512 = vsel %vm498, %v362, 0
        %v515 = vsel %vm498, %v363, 0
        %v518 = vsel %vm498, %v364, 0
        %v521 = vsel %vm498, %v365, 0
        %v524 = vsel %vm498, %v366, 0
        %v527 = vsel %vm498, %v367, 0
        %v530 = vsel %vm498, %v368, 0
        %v533 = vsel %vm498, %v369, 0
        %v536 = vsel %vm498, %v370, 0
        %v539 = vsel %vm498, %v371, 0
        %v542 = vsel %vm498, %v372, 0
        %v545 = vsel %vm498, %v373, 0
        %v548 = vsel %vm498, %v374, 0
        %v551 = vsel %vm498, %v375, 0
        %v554 = vsel %vm498, %v376, 0
        %v557 = vsel %vm498, %v377, 0
        %v560 = vsel %vm498, %v378, 0
        %v563 = vsel %vm498, %v379, 0
        %v566 = vsel %vm498, %v380, 0
        %v569 = vsel %vm498, %v381, 0
        %v572 = vsel %vm498, %v382, 0
        %v575 = vsel %vm498, %v383, 0
        %v578 = vsel %vm498, %v384, 0
        %v581 = vsel %vm498, %v385, 0
        %v584 = vsel %vm498, %v386, 0
        %v587 = vsel %vm498, %v387, 0
        %v590 = vsel %vm498, %v388, 0
        %v593 = vsel %vm498, %v389, 0
        %v596 = vsel %vm498, %v390, 0
        %v599 = vsel %vm498, %v391, 0
        %v602 = vsel %vm498, %v392, 0
        %v605 = vsel %vm498, %v393, 0
        %v608 = vsel %vm498, %v394, 0
        %v611 = vsel %vm498, %v395, 0
        %v614 = vsel %vm498, %v396, 0
        %v617 = vsel %vm498, %v397, 0
        %v620 = vsel %vm498, %v398, 0
        %v623 = vsel %vm498, %v399, 0
        %v626 = vsel %vm498, %v400, 0
        %v629 = vsel %vm498, %v401, 0
        %v632 = vsel %vm498, %v402, 0
        %v635 = vsel %vm498, %v403, 0
        %v638 = vsel %vm498, %v404, 0
        %v641 = vsel %vm498, %v405, 0
        %v644 = vsel %vm498, %v406, 0
        %v647 = vsel %vm498, %v407, 0
        %v650 = vsel %vm498, %v408, 0
        %v653 = vsel %vm498, %v409, 0
        %v656 = vsel %vm498, %v410, 0
        %v659 = vsel %vm498, %v411, 0
        %v662 = vsel %vm498, %v412, 0
        %v665 = vsel %vm498, %v413, 0
        %v668 = vsel %vm498, %v414, 0
        %v671 = vsel %vm498, %v415, 0
        %v674 = vsel %vm498, %v416, 0
        %v677 = vsel %vm498, %v417, 0
        %v680 = vsel %vm498, %v418, 0
        %v683 = vsel %vm498, %v419, 0
        %v686 = vsel %vm498, %v420, 0
        %v689 = vsel %vm498, %v421, 0
        %v692 = vsel %vm498, %v422, 0
        %v695 = vsel %vm498, %v423, 0
        %v698 = vsel %vm498, %v424, 0
        %v701 = vsel %vm498, %v425, 0
        %v704 = vsel %vm498, %v426, 0
        %v707 = vsel %vm498, %v427, 0
        %v710 = vsel %vm498, %v428, 0
        %v713 = vsel %vm498, %v429, 0
        %v716 = vsel %vm498, %v430, 0
        %v719 = vsel %vm498, %v431, 0
        %v722 = vsel %vm498, %v432, 0
        %v725 = vsel %vm498, %v433, 0
        %v728 = vsel %vm498, %v434, 0
        %v731 = vsel %vm498, %v435, 0
        %v734 = vsel %vm498, %v436, 0
        %v737 = vsel %vm498, %v437, 0
        %v740 = vsel %vm498, %v438, 0
        %v743 = vsel %vm498, %v439, 0
        %v746 = vsel %vm498, %v440, 0
        %v749 = vsel %vm498, %v441, 0
        %v752 = vsel %vm498, %v442, 0
        %v755 = vsel %vm498, %v443, 0
        %v758 = vsel %vm498, %v444, 0
        %v761 = vsel %vm498, %v445, 0
        %v764 = vsel %vm498, %v446, 0
        %v767 = vsel %vm498, %v447, 0
        %v770 = vsel %vm498, %v448, 0
        %v773 = vsel %vm498, %v449, 0
        %v776 = vsel %vm498, %v450, 0
        %v779 = vsel %vm498, %v451, 0
        %v782 = vsel %vm498, %v452, 0
        %v785 = vsel %vm498, %v453, 0
        %v788 = vsel %vm498, %v454, 0
        %v791 = vsel %vm498, %v455, 0
        %v794 = vsel %vm498, %v456, 0
        %v797 = vsel %vm498, %v457, 0
        %v800 = vsel %vm498, %v458, 0
        %v803 = vsel %vm498, %v459, 0
        %v806 = vsel %vm498, %v460, 0
        %v809 = vsel %vm498, %v461, 0
        %v812 = vsel %vm498, %v462, 0
        %v815 = vsel %vm498, %v463, 0
        %v818 = vsel %vm498, %v464, 0
        %v821 = vsel %vm498, %v465, 0
        %v824 = vsel %vm498, %v466, 0
        %v827 = vsel %vm498, %v467, 0
        %v830 = vsel %vm498, %v468, 0
        %v833 = vsel %vm498, %v469, 0
        %v836 = vsel %vm498, %v470, 0
        %v839 = vsel %vm498, %v471, 0
        %v842 = vsel %vm498, %v472, 0
        %v845 = vsel %vm498, %v473, 0
        %v848 = vsel %vm498, %v474, 0
        %v851 = vsel %vm498, %v475, 0
        %v854 = vsel %vm498, %v476, 0
        %v857 = vsel %vm498, %v477, 0
        %v860 = vsel %vm498, %v478, 0
        %v863 = vsel %vm498, %v479, 0
        %v866 = vsel %vm498, %v480, 0
        %v869 = vsel %vm498, %v481, 0
        %v872 = vsel %vm498, %v482, 0
        %v875 = vsel %vm498, %v483, 0
        %v878 = vsel %vm498, %v484, 0
        %v881 = vsel %vm498, %v485, 0
        %vm883 = vcmask 1042432
        %v885 = vsel %vm883, %v490, 0
        %887 = vmatprep.subr.mxu0 0.0
        %888 = vmatpush1.msra.mxu0 0.0
        %889 = vmatprep.subr.mxu0 0.0
        %890 = vmatpush1.msra.mxu0 0.0
        %891 = vmatprep.subr.mxu0 0.0
        %892 = vmatpush1.msra.mxu0 0.0
        %893 = vmatprep.subr.mxu0 0.0
        %894 = vmatpush1.msra.mxu0 0.0
        %895 = vmatprep.subr.mxu0 0.0
        %896 = vmatpush1.msra.mxu0 0.0
        %897 = vmatprep.subr.mxu0 0.0
        %898 = vmatpush1.msra.mxu0 0.0
        %899 = vmatprep.subr.mxu0 0.0
        %900 = vmatpush1.msra.mxu0 0.0
        %901 = vmatprep.subr.mxu0 0.0
        %902 = vmatpush1.msra.mxu0 0.0
        %903 = vmatprep.subr.mxu0 0.0
        %904 = vmatpush1.msra.mxu0 0.0
        %905 = vmatprep.subr.mxu0 0.0
        %906 = vmatpush1.msra.mxu0 0.0
        %907 = vmatprep.subr.mxu0 0.0
        %908 = vmatpush1.msra.mxu0 0.0
        %909 = vmatprep.subr.mxu0 0.0
        %910 = vmatpush1.msra.mxu0 0.0
        %911 = vmatprep.subr.mxu0 0.0
        %912 = vmatpush1.msra.mxu0 %v885
        %913 = vmatprep.subr.mxu0 0.0
        %914 = vmatpush1.msra.mxu0 %v489
        %915 = vmatprep.subr.mxu0 0.0
        %916 = vmatpush1.msra.mxu0 %v488
        %917 = vmatprep.subr.mxu0 0.0
        %918 = vmatpush1.msra.mxu0 %v487
        %919 = vmatprep.subr.mxu0 0.0
        %920 = vmatpush2.msra.mxu0 0.0
        %921 = vmatprep.subr.mxu0 0.0
        %922 = vmatpush2.msra.mxu0 0.0
        %923 = vmatprep.subr.mxu0 0.0
        %924 = vmatpush2.msra.mxu0 0.0
        %925 = vmatprep.subr.mxu0 0.0
        %926 = vmatpush2.msra.mxu0 0.0
        %927 = vmatprep.subr.mxu0 0.0
        %928 = vmatpush2.msra.mxu0 0.0
        %929 = vmatprep.subr.mxu0 0.0
        %930 = vmatpush2.msra.mxu0 0.0
        %931 = vmatprep.subr.mxu0 0.0
        %932 = vmatpush2.msra.mxu0 0.0
        %933 = vmatprep.subr.mxu0 0.0
        %934 = vmatpush2.msra.mxu0 0.0
        %935 = vmatprep.subr.mxu0 0.0
        %936 = vmatpush2.msra.mxu0 0.0
        %937 = vmatprep.subr.mxu0 0.0
        %938 = vmatpush2.msra.mxu0 0.0
        %939 = vmatprep.subr.mxu0 0.0
        %940 = vmatpush2.msra.mxu0 0.0
        %941 = vmatprep.subr.mxu0 0.0
        %942 = vmatpush2.msra.mxu0 0.0
        %943 = vmatprep.subr.mxu0 0.0
        %944 = vmatpush2.msra.mxu0 0.0
        %945 = vmatprep.subr.mxu0 0.0
        %946 = vmatpush2.msra.mxu0 0.0
        %947 = vmatprep.subr.mxu0 0.0
        %948 = vmatpush2.msra.mxu0 0.0
        %949 = vmatprep.subr.mxu0 0.0
        %950 = vmatpush2.msra.mxu0 0.0
        %951 = vmatprep.mubr.f32.mxu0 0.0
        %952 = vmatmul.mubr.f32.gmra.mxu0 %v500
        %v953 = vpop.f32.mrf.mxu0
        %v954 = vadd.f32 %v496, %v953
        %v955 = vpop.f32.mrf.mxu0
        %956 = vmatprep.mubr.f32.mxu0 0.0
        %957 = vmatmul.mubr.f32.gmra.mxu0 %v503
        %v958 = vpop.f32.mrf.mxu0
        %v959 = vadd.f32 %v496, %v958
        %v960 = vpop.f32.mrf.mxu0
        %961 = vmatprep.mubr.f32.mxu0 0.0
        %962 = vmatmul.mubr.f32.gmra.mxu0 %v506
        %v963 = vpop.f32.mrf.mxu0
        %v964 = vadd.f32 %v496, %v963
        %v965 = vpop.f32.mrf.mxu0
        %966 = vmatprep.mubr.f32.mxu0 0.0
        %967 = vmatmul.mubr.f32.gmra.mxu0 %v509
        %v968 = vpop.f32.mrf.mxu0
        %v969 = vadd.f32 %v496, %v968
        %v970 = vpop.f32.mrf.mxu0
        %971 = vmatprep.mubr.f32.mxu0 0.0
        %972 = vmatmul.mubr.f32.gmra.mxu0 %v512
        %v973 = vpop.f32.mrf.mxu0
        %v974 = vadd.f32 %v496, %v973
        %v975 = vpop.f32.mrf.mxu0
        %976 = vmatprep.mubr.f32.mxu0 0.0
        %977 = vmatmul.mubr.f32.gmra.mxu0 %v515
        %v978 = vpop.f32.mrf.mxu0
        %v979 = vadd.f32 %v496, %v978
        %v980 = vpop.f32.mrf.mxu0
        %981 = vmatprep.mubr.f32.mxu0 0.0
        %982 = vmatmul.mubr.f32.gmra.mxu0 %v518
        %v983 = vpop.f32.mrf.mxu0
        %v984 = vadd.f32 %v496, %v983
        %v985 = vpop.f32.mrf.mxu0
        %986 = vmatprep.mubr.f32.mxu0 0.0
        %987 = vmatmul.mubr.f32.gmra.mxu0 %v521
        %v988 = vpop.f32.mrf.mxu0
        %v989 = vadd.f32 %v496, %v988
        %v990 = vpop.f32.mrf.mxu0
        %991 = vmatprep.mubr.f32.mxu0 0.0
        %992 = vmatmul.mubr.f32.gmra.mxu0 %v524
        %v993 = vpop.f32.mrf.mxu0
        %v994 = vadd.f32 %v496, %v993
        %v995 = vpop.f32.mrf.mxu0
        %996 = vmatprep.mubr.f32.mxu0 0.0
        %997 = vmatmul.mubr.f32.gmra.mxu0 %v527
        %v998 = vpop.f32.mrf.mxu0
        %v999 = vadd.f32 %v496, %v998
        %v1000 = vpop.f32.mrf.mxu0
        %1001 = vmatprep.mubr.f32.mxu0 0.0
        %1002 = vmatmul.mubr.f32.gmra.mxu0 %v530
        %v1003 = vpop.f32.mrf.mxu0
        %v1004 = vadd.f32 %v496, %v1003
        %v1005 = vpop.f32.mrf.mxu0
        %1006 = vmatprep.mubr.f32.mxu0 0.0
        %1007 = vmatmul.mubr.f32.gmra.mxu0 %v533
        %v1008 = vpop.f32.mrf.mxu0
        %v1009 = vadd.f32 %v496, %v1008
        %v1010 = vpop.f32.mrf.mxu0
        %1011 = vmatprep.mubr.f32.mxu0 0.0
        %1012 = vmatmul.mubr.f32.gmra.mxu0 %v536
        %v1013 = vpop.f32.mrf.mxu0
        %v1014 = vadd.f32 %v496, %v1013
        %v1015 = vpop.f32.mrf.mxu0
        %1016 = vmatprep.mubr.f32.mxu0 0.0
        %1017 = vmatmul.mubr.f32.gmra.mxu0 %v539
        %v1018 = vpop.f32.mrf.mxu0
        %v1019 = vadd.f32 %v496, %v1018
        %v1020 = vpop.f32.mrf.mxu0
        %1021 = vmatprep.mubr.f32.mxu0 0.0
        %1022 = vmatmul.mubr.f32.gmra.mxu0 %v542
        %v1023 = vpop.f32.mrf.mxu0
        %v1024 = vadd.f32 %v496, %v1023
        %v1025 = vpop.f32.mrf.mxu0
        %1026 = vmatprep.mubr.f32.mxu0 0.0
        %1027 = vmatmul.mubr.f32.gmra.mxu0 %v545
        %v1028 = vpop.f32.mrf.mxu0
        %v1029 = vadd.f32 %v496, %v1028
        %v1030 = vpop.f32.mrf.mxu0
        %1031 = vmatprep.mubr.f32.mxu0 0.0
        %1032 = vmatmul.mubr.f32.gmra.mxu0 %v548
        %v1033 = vpop.f32.mrf.mxu0
        %v1034 = vadd.f32 %v496, %v1033
        %v1035 = vpop.f32.mrf.mxu0
        %1036 = vmatprep.mubr.f32.mxu0 0.0
        %1037 = vmatmul.mubr.f32.gmra.mxu0 %v551
        %v1038 = vpop.f32.mrf.mxu0
        %v1039 = vadd.f32 %v496, %v1038
        %v1040 = vpop.f32.mrf.mxu0
        %1041 = vmatprep.mubr.f32.mxu0 0.0
        %1042 = vmatmul.mubr.f32.gmra.mxu0 %v554
        %v1043 = vpop.f32.mrf.mxu0
        %v1044 = vadd.f32 %v496, %v1043
        %v1045 = vpop.f32.mrf.mxu0
        %1046 = vmatprep.mubr.f32.mxu0 0.0
        %1047 = vmatmul.mubr.f32.gmra.mxu0 %v557
        %v1048 = vpop.f32.mrf.mxu0
        %v1049 = vadd.f32 %v496, %v1048
        %v1050 = vpop.f32.mrf.mxu0
        %1051 = vmatprep.mubr.f32.mxu0 0.0
        %1052 = vmatmul.mubr.f32.gmra.mxu0 %v560
        %v1053 = vpop.f32.mrf.mxu0
        %v1054 = vadd.f32 %v496, %v1053
        %v1055 = vpop.f32.mrf.mxu0
        %1056 = vmatprep.mubr.f32.mxu0 0.0
        %1057 = vmatmul.mubr.f32.gmra.mxu0 %v563
        %v1058 = vpop.f32.mrf.mxu0
        %v1059 = vadd.f32 %v496, %v1058
        %v1060 = vpop.f32.mrf.mxu0
        %1061 = vmatprep.mubr.f32.mxu0 0.0
        %1062 = vmatmul.mubr.f32.gmra.mxu0 %v566
        %v1063 = vpop.f32.mrf.mxu0
        %v1064 = vadd.f32 %v496, %v1063
        %v1065 = vpop.f32.mrf.mxu0
        %1066 = vmatprep.mubr.f32.mxu0 0.0
        %1067 = vmatmul.mubr.f32.gmra.mxu0 %v569
        %v1068 = vpop.f32.mrf.mxu0
        %v1069 = vadd.f32 %v496, %v1068
        %v1070 = vpop.f32.mrf.mxu0
        %1071 = vmatprep.mubr.f32.mxu0 0.0
        %1072 = vmatmul.mubr.f32.gmra.mxu0 %v572
        %v1073 = vpop.f32.mrf.mxu0
        %v1074 = vadd.f32 %v496, %v1073
        %v1075 = vpop.f32.mrf.mxu0
        %1076 = vmatprep.mubr.f32.mxu0 0.0
        %1077 = vmatmul.mubr.f32.gmra.mxu0 %v575
        %v1078 = vpop.f32.mrf.mxu0
        %v1079 = vadd.f32 %v496, %v1078
        %v1080 = vpop.f32.mrf.mxu0
        %1081 = vmatprep.mubr.f32.mxu0 0.0
        %1082 = vmatmul.mubr.f32.gmra.mxu0 %v578
        %v1083 = vpop.f32.mrf.mxu0
        %v1084 = vadd.f32 %v496, %v1083
        %v1085 = vpop.f32.mrf.mxu0
        %1086 = vmatprep.mubr.f32.mxu0 0.0
        %1087 = vmatmul.mubr.f32.gmra.mxu0 %v581
        %v1088 = vpop.f32.mrf.mxu0
        %v1089 = vadd.f32 %v496, %v1088
        %v1090 = vpop.f32.mrf.mxu0
        %1091 = vmatprep.mubr.f32.mxu0 0.0
        %1092 = vmatmul.mubr.f32.gmra.mxu0 %v584
        %v1093 = vpop.f32.mrf.mxu0
        %v1094 = vadd.f32 %v496, %v1093
        %v1095 = vpop.f32.mrf.mxu0
        %1096 = vmatprep.mubr.f32.mxu0 0.0
        %1097 = vmatmul.mubr.f32.gmra.mxu0 %v587
        %v1098 = vpop.f32.mrf.mxu0
        %v1099 = vadd.f32 %v496, %v1098
        %v1100 = vpop.f32.mrf.mxu0
        %1101 = vmatprep.mubr.f32.mxu0 0.0
        %1102 = vmatmul.mubr.f32.gmra.mxu0 %v590
        %v1103 = vpop.f32.mrf.mxu0
        %v1104 = vadd.f32 %v496, %v1103
        %v1105 = vpop.f32.mrf.mxu0
        %1106 = vmatprep.mubr.f32.mxu0 0.0
        %1107 = vmatmul.mubr.f32.gmra.mxu0 %v593
        %v1108 = vpop.f32.mrf.mxu0
        %v1109 = vadd.f32 %v496, %v1108
        %v1110 = vpop.f32.mrf.mxu0
        %1111 = vmatprep.mubr.f32.mxu0 0.0
        %1112 = vmatmul.mubr.f32.gmra.mxu0 %v596
        %v1113 = vpop.f32.mrf.mxu0
        %v1114 = vadd.f32 %v496, %v1113
        %v1115 = vpop.f32.mrf.mxu0
        %1116 = vmatprep.mubr.f32.mxu0 0.0
        %1117 = vmatmul.mubr.f32.gmra.mxu0 %v599
        %v1118 = vpop.f32.mrf.mxu0
        %v1119 = vadd.f32 %v496, %v1118
        %v1120 = vpop.f32.mrf.mxu0
        %1121 = vmatprep.mubr.f32.mxu0 0.0
        %1122 = vmatmul.mubr.f32.gmra.mxu0 %v602
        %v1123 = vpop.f32.mrf.mxu0
        %v1124 = vadd.f32 %v496, %v1123
        %v1125 = vpop.f32.mrf.mxu0
        %1126 = vmatprep.mubr.f32.mxu0 0.0
        %1127 = vmatmul.mubr.f32.gmra.mxu0 %v605
        %v1128 = vpop.f32.mrf.mxu0
        %v1129 = vadd.f32 %v496, %v1128
        %v1130 = vpop.f32.mrf.mxu0
        %1131 = vmatprep.mubr.f32.mxu0 0.0
        %1132 = vmatmul.mubr.f32.gmra.mxu0 %v608
        %v1133 = vpop.f32.mrf.mxu0
        %v1134 = vadd.f32 %v496, %v1133
        %v1135 = vpop.f32.mrf.mxu0
        %1136 = vmatprep.mubr.f32.mxu0 0.0
        %1137 = vmatmul.mubr.f32.gmra.mxu0 %v611
        %v1138 = vpop.f32.mrf.mxu0
        %v1139 = vadd.f32 %v496, %v1138
        %v1140 = vpop.f32.mrf.mxu0
        %1141 = vmatprep.mubr.f32.mxu0 0.0
        %1142 = vmatmul.mubr.f32.gmra.mxu0 %v614
        %v1143 = vpop.f32.mrf.mxu0
        %v1144 = vadd.f32 %v496, %v1143
        %v1145 = vpop.f32.mrf.mxu0
        %1146 = vmatprep.mubr.f32.mxu0 0.0
        %1147 = vmatmul.mubr.f32.gmra.mxu0 %v617
        %v1148 = vpop.f32.mrf.mxu0
        %v1149 = vadd.f32 %v496, %v1148
        %v1150 = vpop.f32.mrf.mxu0
        %1151 = vmatprep.mubr.f32.mxu0 0.0
        %1152 = vmatmul.mubr.f32.gmra.mxu0 %v620
        %v1153 = vpop.f32.mrf.mxu0
        %v1154 = vadd.f32 %v496, %v1153
        %v1155 = vpop.f32.mrf.mxu0
        %1156 = vmatprep.mubr.f32.mxu0 0.0
        %1157 = vmatmul.mubr.f32.gmra.mxu0 %v623
        %v1158 = vpop.f32.mrf.mxu0
        %v1159 = vadd.f32 %v496, %v1158
        %v1160 = vpop.f32.mrf.mxu0
        %1161 = vmatprep.mubr.f32.mxu0 0.0
        %1162 = vmatmul.mubr.f32.gmra.mxu0 %v626
        %v1163 = vpop.f32.mrf.mxu0
        %v1164 = vadd.f32 %v496, %v1163
        %v1165 = vpop.f32.mrf.mxu0
        %1166 = vmatprep.mubr.f32.mxu0 0.0
        %1167 = vmatmul.mubr.f32.gmra.mxu0 %v629
        %v1168 = vpop.f32.mrf.mxu0
        %v1169 = vadd.f32 %v496, %v1168
        %v1170 = vpop.f32.mrf.mxu0
        %1171 = vmatprep.mubr.f32.mxu0 0.0
        %1172 = vmatmul.mubr.f32.gmra.mxu0 %v632
        %v1173 = vpop.f32.mrf.mxu0
        %v1174 = vadd.f32 %v496, %v1173
        %v1175 = vpop.f32.mrf.mxu0
        %1176 = vmatprep.mubr.f32.mxu0 0.0
        %1177 = vmatmul.mubr.f32.gmra.mxu0 %v635
        %v1178 = vpop.f32.mrf.mxu0
        %v1179 = vadd.f32 %v496, %v1178
        %v1180 = vpop.f32.mrf.mxu0
        %1181 = vmatprep.mubr.f32.mxu0 0.0
        %1182 = vmatmul.mubr.f32.gmra.mxu0 %v638
        %v1183 = vpop.f32.mrf.mxu0
        %v1184 = vadd.f32 %v496, %v1183
        %v1185 = vpop.f32.mrf.mxu0
        %1186 = vmatprep.mubr.f32.mxu0 0.0
        %1187 = vmatmul.mubr.f32.gmra.mxu0 %v641
        %v1188 = vpop.f32.mrf.mxu0
        %v1189 = vadd.f32 %v496, %v1188
        %v1190 = vpop.f32.mrf.mxu0
        %1191 = vmatprep.mubr.f32.mxu0 0.0
        %1192 = vmatmul.mubr.f32.gmra.mxu0 %v644
        %v1193 = vpop.f32.mrf.mxu0
        %v1194 = vadd.f32 %v496, %v1193
        %v1195 = vpop.f32.mrf.mxu0
        %1196 = vmatprep.mubr.f32.mxu0 0.0
        %1197 = vmatmul.mubr.f32.gmra.mxu0 %v647
        %v1198 = vpop.f32.mrf.mxu0
        %v1199 = vadd.f32 %v496, %v1198
        %v1200 = vpop.f32.mrf.mxu0
        %1201 = vmatprep.mubr.f32.mxu0 0.0
        %1202 = vmatmul.mubr.f32.gmra.mxu0 %v650
        %v1203 = vpop.f32.mrf.mxu0
        %v1204 = vadd.f32 %v496, %v1203
        %v1205 = vpop.f32.mrf.mxu0
        %1206 = vmatprep.mubr.f32.mxu0 0.0
        %1207 = vmatmul.mubr.f32.gmra.mxu0 %v653
        %v1208 = vpop.f32.mrf.mxu0
        %v1209 = vadd.f32 %v496, %v1208
        %v1210 = vpop.f32.mrf.mxu0
        %1211 = vmatprep.mubr.f32.mxu0 0.0
        %1212 = vmatmul.mubr.f32.gmra.mxu0 %v656
        %v1213 = vpop.f32.mrf.mxu0
        %v1214 = vadd.f32 %v496, %v1213
        %v1215 = vpop.f32.mrf.mxu0
        %1216 = vmatprep.mubr.f32.mxu0 0.0
        %1217 = vmatmul.mubr.f32.gmra.mxu0 %v659
        %v1218 = vpop.f32.mrf.mxu0
        %v1219 = vadd.f32 %v496, %v1218
        %v1220 = vpop.f32.mrf.mxu0
        %1221 = vmatprep.mubr.f32.mxu0 0.0
        %1222 = vmatmul.mubr.f32.gmra.mxu0 %v662
        %v1223 = vpop.f32.mrf.mxu0
        %v1224 = vadd.f32 %v496, %v1223
        %v1225 = vpop.f32.mrf.mxu0
        %1226 = vmatprep.mubr.f32.mxu0 0.0
        %1227 = vmatmul.mubr.f32.gmra.mxu0 %v665
        %v1228 = vpop.f32.mrf.mxu0
        %v1229 = vadd.f32 %v496, %v1228
        %v1230 = vpop.f32.mrf.mxu0
        %1231 = vmatprep.mubr.f32.mxu0 0.0
        %1232 = vmatmul.mubr.f32.gmra.mxu0 %v668
        %v1233 = vpop.f32.mrf.mxu0
        %v1234 = vadd.f32 %v496, %v1233
        %v1235 = vpop.f32.mrf.mxu0
        %1236 = vmatprep.mubr.f32.mxu0 0.0
        %1237 = vmatmul.mubr.f32.gmra.mxu0 %v671
        %v1238 = vpop.f32.mrf.mxu0
        %v1239 = vadd.f32 %v496, %v1238
        %v1240 = vpop.f32.mrf.mxu0
        %1241 = vmatprep.mubr.f32.mxu0 0.0
        %1242 = vmatmul.mubr.f32.gmra.mxu0 %v674
        %v1243 = vpop.f32.mrf.mxu0
        %v1244 = vadd.f32 %v496, %v1243
        %v1245 = vpop.f32.mrf.mxu0
        %1246 = vmatprep.mubr.f32.mxu0 0.0
        %1247 = vmatmul.mubr.f32.gmra.mxu0 %v677
        %v1248 = vpop.f32.mrf.mxu0
        %v1249 = vadd.f32 %v496, %v1248
        %v1250 = vpop.f32.mrf.mxu0
        %1251 = vmatprep.mubr.f32.mxu0 0.0
        %1252 = vmatmul.mubr.f32.gmra.mxu0 %v680
        %v1253 = vpop.f32.mrf.mxu0
        %v1254 = vadd.f32 %v496, %v1253
        %v1255 = vpop.f32.mrf.mxu0
        %1256 = vmatprep.mubr.f32.mxu0 0.0
        %1257 = vmatmul.mubr.f32.gmra.mxu0 %v683
        %v1258 = vpop.f32.mrf.mxu0
        %v1259 = vadd.f32 %v496, %v1258
        %v1260 = vpop.f32.mrf.mxu0
        %1261 = vmatprep.mubr.f32.mxu0 0.0
        %1262 = vmatmul.mubr.f32.gmra.mxu0 %v686
        %v1263 = vpop.f32.mrf.mxu0
        %v1264 = vadd.f32 %v496, %v1263
        %v1265 = vpop.f32.mrf.mxu0
        %1266 = vmatprep.mubr.f32.mxu0 0.0
        %1267 = vmatmul.mubr.f32.gmra.mxu0 %v689
        %v1268 = vpop.f32.mrf.mxu0
        %v1269 = vadd.f32 %v496, %v1268
        %v1270 = vpop.f32.mrf.mxu0
        %1271 = vmatprep.mubr.f32.mxu0 0.0
        %1272 = vmatmul.mubr.f32.gmra.mxu0 %v692
        %v1273 = vpop.f32.mrf.mxu0
        %v1274 = vadd.f32 %v496, %v1273
        %v1275 = vpop.f32.mrf.mxu0
        %1276 = vmatprep.mubr.f32.mxu0 0.0
        %1277 = vmatmul.mubr.f32.gmra.mxu0 %v695
        %v1278 = vpop.f32.mrf.mxu0
        %v1279 = vadd.f32 %v496, %v1278
        %v1280 = vpop.f32.mrf.mxu0
        %1281 = vmatprep.mubr.f32.mxu0 0.0
        %1282 = vmatmul.mubr.f32.gmra.mxu0 %v698
        %v1283 = vpop.f32.mrf.mxu0
        %v1284 = vadd.f32 %v496, %v1283
        %v1285 = vpop.f32.mrf.mxu0
        %1286 = vmatprep.mubr.f32.mxu0 0.0
        %1287 = vmatmul.mubr.f32.gmra.mxu0 %v701
        %v1288 = vpop.f32.mrf.mxu0
        %v1289 = vadd.f32 %v496, %v1288
        %v1290 = vpop.f32.mrf.mxu0
        %1291 = vmatprep.mubr.f32.mxu0 0.0
        %1292 = vmatmul.mubr.f32.gmra.mxu0 %v704
        %v1293 = vpop.f32.mrf.mxu0
        %v1294 = vadd.f32 %v496, %v1293
        %v1295 = vpop.f32.mrf.mxu0
        %1296 = vmatprep.mubr.f32.mxu0 0.0
        %1297 = vmatmul.mubr.f32.gmra.mxu0 %v707
        %v1298 = vpop.f32.mrf.mxu0
        %v1299 = vadd.f32 %v496, %v1298
        %v1300 = vpop.f32.mrf.mxu0
        %1301 = vmatprep.mubr.f32.mxu0 0.0
        %1302 = vmatmul.mubr.f32.gmra.mxu0 %v710
        %v1303 = vpop.f32.mrf.mxu0
        %v1304 = vadd.f32 %v496, %v1303
        %v1305 = vpop.f32.mrf.mxu0
        %1306 = vmatprep.mubr.f32.mxu0 0.0
        %1307 = vmatmul.mubr.f32.gmra.mxu0 %v713
        %v1308 = vpop.f32.mrf.mxu0
        %v1309 = vadd.f32 %v496, %v1308
        %v1310 = vpop.f32.mrf.mxu0
        %1311 = vmatprep.mubr.f32.mxu0 0.0
        %1312 = vmatmul.mubr.f32.gmra.mxu0 %v716
        %v1313 = vpop.f32.mrf.mxu0
        %v1314 = vadd.f32 %v496, %v1313
        %v1315 = vpop.f32.mrf.mxu0
        %1316 = vmatprep.mubr.f32.mxu0 0.0
        %1317 = vmatmul.mubr.f32.gmra.mxu0 %v719
        %v1318 = vpop.f32.mrf.mxu0
        %v1319 = vadd.f32 %v496, %v1318
        %v1320 = vpop.f32.mrf.mxu0
        %1321 = vmatprep.mubr.f32.mxu0 0.0
        %1322 = vmatmul.mubr.f32.gmra.mxu0 %v722
        %v1323 = vpop.f32.mrf.mxu0
        %v1324 = vadd.f32 %v496, %v1323
        %v1325 = vpop.f32.mrf.mxu0
        %1326 = vmatprep.mubr.f32.mxu0 0.0
        %1327 = vmatmul.mubr.f32.gmra.mxu0 %v725
        %v1328 = vpop.f32.mrf.mxu0
        %v1329 = vadd.f32 %v496, %v1328
        %v1330 = vpop.f32.mrf.mxu0
        %1331 = vmatprep.mubr.f32.mxu0 0.0
        %1332 = vmatmul.mubr.f32.gmra.mxu0 %v728
        %v1333 = vpop.f32.mrf.mxu0
        %v1334 = vadd.f32 %v496, %v1333
        %v1335 = vpop.f32.mrf.mxu0
        %1336 = vmatprep.mubr.f32.mxu0 0.0
        %1337 = vmatmul.mubr.f32.gmra.mxu0 %v731
        %v1338 = vpop.f32.mrf.mxu0
        %v1339 = vadd.f32 %v496, %v1338
        %v1340 = vpop.f32.mrf.mxu0
        %1341 = vmatprep.mubr.f32.mxu0 0.0
        %1342 = vmatmul.mubr.f32.gmra.mxu0 %v734
        %v1343 = vpop.f32.mrf.mxu0
        %v1344 = vadd.f32 %v496, %v1343
        %v1345 = vpop.f32.mrf.mxu0
        %1346 = vmatprep.mubr.f32.mxu0 0.0
        %1347 = vmatmul.mubr.f32.gmra.mxu0 %v737
        %v1348 = vpop.f32.mrf.mxu0
        %v1349 = vadd.f32 %v496, %v1348
        %v1350 = vpop.f32.mrf.mxu0
        %1351 = vmatprep.mubr.f32.mxu0 0.0
        %1352 = vmatmul.mubr.f32.gmra.mxu0 %v740
        %v1353 = vpop.f32.mrf.mxu0
        %v1354 = vadd.f32 %v496, %v1353
        %v1355 = vpop.f32.mrf.mxu0
        %1356 = vmatprep.mubr.f32.mxu0 0.0
        %1357 = vmatmul.mubr.f32.gmra.mxu0 %v743
        %v1358 = vpop.f32.mrf.mxu0
        %v1359 = vadd.f32 %v496, %v1358
        %v1360 = vpop.f32.mrf.mxu0
        %1361 = vmatprep.mubr.f32.mxu0 0.0
        %1362 = vmatmul.mubr.f32.gmra.mxu0 %v746
        %v1363 = vpop.f32.mrf.mxu0
        %v1364 = vadd.f32 %v496, %v1363
        %v1365 = vpop.f32.mrf.mxu0
        %1366 = vmatprep.mubr.f32.mxu0 0.0
        %1367 = vmatmul.mubr.f32.gmra.mxu0 %v749
        %v1368 = vpop.f32.mrf.mxu0
        %v1369 = vadd.f32 %v496, %v1368
        %v1370 = vpop.f32.mrf.mxu0
        %1371 = vmatprep.mubr.f32.mxu0 0.0
        %1372 = vmatmul.mubr.f32.gmra.mxu0 %v752
        %v1373 = vpop.f32.mrf.mxu0
        %v1374 = vadd.f32 %v496, %v1373
        %v1375 = vpop.f32.mrf.mxu0
        %1376 = vmatprep.mubr.f32.mxu0 0.0
        %1377 = vmatmul.mubr.f32.gmra.mxu0 %v755
        %v1378 = vpop.f32.mrf.mxu0
        %v1379 = vadd.f32 %v496, %v1378
        %v1380 = vpop.f32.mrf.mxu0
        %1381 = vmatprep.mubr.f32.mxu0 0.0
        %1382 = vmatmul.mubr.f32.gmra.mxu0 %v758
        %v1383 = vpop.f32.mrf.mxu0
        %v1384 = vadd.f32 %v496, %v1383
        %v1385 = vpop.f32.mrf.mxu0
        %1386 = vmatprep.mubr.f32.mxu0 0.0
        %1387 = vmatmul.mubr.f32.gmra.mxu0 %v761
        %v1388 = vpop.f32.mrf.mxu0
        %v1389 = vadd.f32 %v496, %v1388
        %v1390 = vpop.f32.mrf.mxu0
        %1391 = vmatprep.mubr.f32.mxu0 0.0
        %1392 = vmatmul.mubr.f32.gmra.mxu0 %v764
        %v1393 = vpop.f32.mrf.mxu0
        %v1394 = vadd.f32 %v496, %v1393
        %v1395 = vpop.f32.mrf.mxu0
        %1396 = vmatprep.mubr.f32.mxu0 0.0
        %1397 = vmatmul.mubr.f32.gmra.mxu0 %v767
        %v1398 = vpop.f32.mrf.mxu0
        %v1399 = vadd.f32 %v496, %v1398
        %v1400 = vpop.f32.mrf.mxu0
        %1401 = vmatprep.mubr.f32.mxu0 0.0
        %1402 = vmatmul.mubr.f32.gmra.mxu0 %v770
        %v1403 = vpop.f32.mrf.mxu0
        %v1404 = vadd.f32 %v496, %v1403
        %v1405 = vpop.f32.mrf.mxu0
        %1406 = vmatprep.mubr.f32.mxu0 0.0
        %1407 = vmatmul.mubr.f32.gmra.mxu0 %v773
        %v1408 = vpop.f32.mrf.mxu0
        %v1409 = vadd.f32 %v496, %v1408
        %v1410 = vpop.f32.mrf.mxu0
        %1411 = vmatprep.mubr.f32.mxu0 0.0
        %1412 = vmatmul.mubr.f32.gmra.mxu0 %v776
        %v1413 = vpop.f32.mrf.mxu0
        %v1414 = vadd.f32 %v496, %v1413
        %v1415 = vpop.f32.mrf.mxu0
        %1416 = vmatprep.mubr.f32.mxu0 0.0
        %1417 = vmatmul.mubr.f32.gmra.mxu0 %v779
        %v1418 = vpop.f32.mrf.mxu0
        %v1419 = vadd.f32 %v496, %v1418
        %v1420 = vpop.f32.mrf.mxu0
        %1421 = vmatprep.mubr.f32.mxu0 0.0
        %1422 = vmatmul.mubr.f32.gmra.mxu0 %v782
        %v1423 = vpop.f32.mrf.mxu0
        %v1424 = vadd.f32 %v496, %v1423
        %v1425 = vpop.f32.mrf.mxu0
        %1426 = vmatprep.mubr.f32.mxu0 0.0
        %1427 = vmatmul.mubr.f32.gmra.mxu0 %v785
        %v1428 = vpop.f32.mrf.mxu0
        %v1429 = vadd.f32 %v496, %v1428
        %v1430 = vpop.f32.mrf.mxu0
        %1431 = vmatprep.mubr.f32.mxu0 0.0
        %1432 = vmatmul.mubr.f32.gmra.mxu0 %v788
        %v1433 = vpop.f32.mrf.mxu0
        %v1434 = vadd.f32 %v496, %v1433
        %v1435 = vpop.f32.mrf.mxu0
        %1436 = vmatprep.mubr.f32.mxu0 0.0
        %1437 = vmatmul.mubr.f32.gmra.mxu0 %v791
        %v1438 = vpop.f32.mrf.mxu0
        %v1439 = vadd.f32 %v496, %v1438
        %v1440 = vpop.f32.mrf.mxu0
        %1441 = vmatprep.mubr.f32.mxu0 0.0
        %1442 = vmatmul.mubr.f32.gmra.mxu0 %v794
        %v1443 = vpop.f32.mrf.mxu0
        %v1444 = vadd.f32 %v496, %v1443
        %v1445 = vpop.f32.mrf.mxu0
        %1446 = vmatprep.mubr.f32.mxu0 0.0
        %1447 = vmatmul.mubr.f32.gmra.mxu0 %v797
        %v1448 = vpop.f32.mrf.mxu0
        %v1449 = vadd.f32 %v496, %v1448
        %v1450 = vpop.f32.mrf.mxu0
        %1451 = vmatprep.mubr.f32.mxu0 0.0
        %1452 = vmatmul.mubr.f32.gmra.mxu0 %v800
        %v1453 = vpop.f32.mrf.mxu0
        %v1454 = vadd.f32 %v496, %v1453
        %v1455 = vpop.f32.mrf.mxu0
        %1456 = vmatprep.mubr.f32.mxu0 0.0
        %1457 = vmatmul.mubr.f32.gmra.mxu0 %v803
        %v1458 = vpop.f32.mrf.mxu0
        %v1459 = vadd.f32 %v496, %v1458
        %v1460 = vpop.f32.mrf.mxu0
        %1461 = vmatprep.mubr.f32.mxu0 0.0
        %1462 = vmatmul.mubr.f32.gmra.mxu0 %v806
        %v1463 = vpop.f32.mrf.mxu0
        %v1464 = vadd.f32 %v496, %v1463
        %v1465 = vpop.f32.mrf.mxu0
        %1466 = vmatprep.mubr.f32.mxu0 0.0
        %1467 = vmatmul.mubr.f32.gmra.mxu0 %v809
        %v1468 = vpop.f32.mrf.mxu0
        %v1469 = vadd.f32 %v496, %v1468
        %v1470 = vpop.f32.mrf.mxu0
        %1471 = vmatprep.mubr.f32.mxu0 0.0
        %1472 = vmatmul.mubr.f32.gmra.mxu0 %v812
        %v1473 = vpop.f32.mrf.mxu0
        %v1474 = vadd.f32 %v496, %v1473
        %v1475 = vpop.f32.mrf.mxu0
        %1476 = vmatprep.mubr.f32.mxu0 0.0
        %1477 = vmatmul.mubr.f32.gmra.mxu0 %v815
        %v1478 = vpop.f32.mrf.mxu0
        %v1479 = vadd.f32 %v496, %v1478
        %v1480 = vpop.f32.mrf.mxu0
        %1481 = vmatprep.mubr.f32.mxu0 0.0
        %1482 = vmatmul.mubr.f32.gmra.mxu0 %v818
        %v1483 = vpop.f32.mrf.mxu0
        %v1484 = vadd.f32 %v496, %v1483
        %v1485 = vpop.f32.mrf.mxu0
        %1486 = vmatprep.mubr.f32.mxu0 0.0
        %1487 = vmatmul.mubr.f32.gmra.mxu0 %v821
        %v1488 = vpop.f32.mrf.mxu0
        %v1489 = vadd.f32 %v496, %v1488
        %v1490 = vpop.f32.mrf.mxu0
        %1491 = vmatprep.mubr.f32.mxu0 0.0
        %1492 = vmatmul.mubr.f32.gmra.mxu0 %v824
        %v1493 = vpop.f32.mrf.mxu0
        %v1494 = vadd.f32 %v496, %v1493
        %v1495 = vpop.f32.mrf.mxu0
        %1496 = vmatprep.mubr.f32.mxu0 0.0
        %1497 = vmatmul.mubr.f32.gmra.mxu0 %v827
        %v1498 = vpop.f32.mrf.mxu0
        %v1499 = vadd.f32 %v496, %v1498
        %v1500 = vpop.f32.mrf.mxu0
        %1501 = vmatprep.mubr.f32.mxu0 0.0
        %1502 = vmatmul.mubr.f32.gmra.mxu0 %v830
        %v1503 = vpop.f32.mrf.mxu0
        %v1504 = vadd.f32 %v496, %v1503
        %v1505 = vpop.f32.mrf.mxu0
        %1506 = vmatprep.mubr.f32.mxu0 0.0
        %1507 = vmatmul.mubr.f32.gmra.mxu0 %v833
        %v1508 = vpop.f32.mrf.mxu0
        %v1509 = vadd.f32 %v496, %v1508
        %v1510 = vpop.f32.mrf.mxu0
        %1511 = vmatprep.mubr.f32.mxu0 0.0
        %1512 = vmatmul.mubr.f32.gmra.mxu0 %v836
        %v1513 = vpop.f32.mrf.mxu0
        %v1514 = vadd.f32 %v496, %v1513
        %v1515 = vpop.f32.mrf.mxu0
        %1516 = vmatprep.mubr.f32.mxu0 0.0
        %1517 = vmatmul.mubr.f32.gmra.mxu0 %v839
        %v1518 = vpop.f32.mrf.mxu0
        %v1519 = vadd.f32 %v496, %v1518
        %v1520 = vpop.f32.mrf.mxu0
        %1521 = vmatprep.mubr.f32.mxu0 0.0
        %1522 = vmatmul.mubr.f32.gmra.mxu0 %v842
        %v1523 = vpop.f32.mrf.mxu0
        %v1524 = vadd.f32 %v496, %v1523
        %v1525 = vpop.f32.mrf.mxu0
        %1526 = vmatprep.mubr.f32.mxu0 0.0
        %1527 = vmatmul.mubr.f32.gmra.mxu0 %v845
        %v1528 = vpop.f32.mrf.mxu0
        %v1529 = vadd.f32 %v496, %v1528
        %v1530 = vpop.f32.mrf.mxu0
        %1531 = vmatprep.mubr.f32.mxu0 0.0
        %1532 = vmatmul.mubr.f32.gmra.mxu0 %v848
        %v1533 = vpop.f32.mrf.mxu0
        %v1534 = vadd.f32 %v496, %v1533
        %v1535 = vpop.f32.mrf.mxu0
        %1536 = vmatprep.mubr.f32.mxu0 0.0
        %1537 = vmatmul.mubr.f32.gmra.mxu0 %v851
        %v1538 = vpop.f32.mrf.mxu0
        %v1539 = vadd.f32 %v496, %v1538
        %v1540 = vpop.f32.mrf.mxu0
        %1541 = vmatprep.mubr.f32.mxu0 0.0
        %1542 = vmatmul.mubr.f32.gmra.mxu0 %v854
        %v1543 = vpop.f32.mrf.mxu0
        %v1544 = vadd.f32 %v496, %v1543
        %v1545 = vpop.f32.mrf.mxu0
        %1546 = vmatprep.mubr.f32.mxu0 0.0
        %1547 = vmatmul.mubr.f32.gmra.mxu0 %v857
        %v1548 = vpop.f32.mrf.mxu0
        %v1549 = vadd.f32 %v496, %v1548
        %v1550 = vpop.f32.mrf.mxu0
        %1551 = vmatprep.mubr.f32.mxu0 0.0
        %1552 = vmatmul.mubr.f32.gmra.mxu0 %v860
        %v1553 = vpop.f32.mrf.mxu0
        %v1554 = vadd.f32 %v496, %v1553
        %v1555 = vpop.f32.mrf.mxu0
        %1556 = vmatprep.mubr.f32.mxu0 0.0
        %1557 = vmatmul.mubr.f32.gmra.mxu0 %v863
        %v1558 = vpop.f32.mrf.mxu0
        %v1559 = vadd.f32 %v496, %v1558
        %v1560 = vpop.f32.mrf.mxu0
        %1561 = vmatprep.mubr.f32.mxu0 0.0
        %1562 = vmatmul.mubr.f32.gmra.mxu0 %v866
        %v1563 = vpop.f32.mrf.mxu0
        %v1564 = vadd.f32 %v496, %v1563
        %v1565 = vpop.f32.mrf.mxu0
        %1566 = vmatprep.mubr.f32.mxu0 0.0
        %1567 = vmatmul.mubr.f32.gmra.mxu0 %v869
        %v1568 = vpop.f32.mrf.mxu0
        %v1569 = vadd.f32 %v496, %v1568
        %v1570 = vpop.f32.mrf.mxu0
        %1571 = vmatprep.mubr.f32.mxu0 0.0
        %1572 = vmatmul.mubr.f32.gmra.mxu0 %v872
        %v1573 = vpop.f32.mrf.mxu0
        %v1574 = vadd.f32 %v496, %v1573
        %v1575 = vpop.f32.mrf.mxu0
        %1576 = vmatprep.mubr.f32.mxu0 0.0
        %1577 = vmatmul.mubr.f32.gmra.mxu0 %v875
        %v1578 = vpop.f32.mrf.mxu0
        %v1579 = vadd.f32 %v496, %v1578
        %v1580 = vpop.f32.mrf.mxu0
        %1581 = vmatprep.mubr.f32.mxu0 0.0
        %1582 = vmatmul.mubr.f32.gmra.mxu0 %v878
        %v1583 = vpop.f32.mrf.mxu0
        %v1584 = vadd.f32 %v496, %v1583
        %v1585 = vpop.f32.mrf.mxu0
        %1586 = vmatprep.mubr.f32.mxu0 0.0
        %1587 = vmatmul.mubr.f32.gmra.mxu0 %v881
        %v1588 = vpop.f32.mrf.mxu0
        %v1589 = vadd.f32 %v496, %v1588
        %v1590 = vpop.f32.mrf.mxu0
        %1591 = vdwg.mxu0
        %v1592 = vmax.f32 %v954, 1e-06
        %v1593 = vmax.f32 %v959, 1e-06
        %v1594 = vmax.f32 %v964, 1e-06
        %v1595 = vmax.f32 %v969, 1e-06
        %v1596 = vmax.f32 %v974, 1e-06
        %v1597 = vmax.f32 %v979, 1e-06
        %v1598 = vmax.f32 %v984, 1e-06
        %v1599 = vmax.f32 %v989, 1e-06
        %v1600 = vmax.f32 %v994, 1e-06
        %v1601 = vmax.f32 %v999, 1e-06
        %v1602 = vmax.f32 %v1004, 1e-06
        %v1603 = vmax.f32 %v1009, 1e-06
        %v1604 = vmax.f32 %v1014, 1e-06
        %v1605 = vmax.f32 %v1019, 1e-06
        %v1606 = vmax.f32 %v1024, 1e-06
        %v1607 = vmax.f32 %v1029, 1e-06
        %v1608 = vmax.f32 %v1034, 1e-06
        %v1609 = vmax.f32 %v1039, 1e-06
        %v1610 = vmax.f32 %v1044, 1e-06
        %v1611 = vmax.f32 %v1049, 1e-06
        %v1612 = vmax.f32 %v1054, 1e-06
        %v1613 = vmax.f32 %v1059, 1e-06
        %v1614 = vmax.f32 %v1064, 1e-06
        %v1615 = vmax.f32 %v1069, 1e-06
        %v1616 = vmax.f32 %v1074, 1e-06
        %v1617 = vmax.f32 %v1079, 1e-06
        %v1618 = vmax.f32 %v1084, 1e-06
        %v1619 = vmax.f32 %v1089, 1e-06
        %v1620 = vmax.f32 %v1094, 1e-06
        %v1621 = vmax.f32 %v1099, 1e-06
        %v1622 = vmax.f32 %v1104, 1e-06
        %v1623 = vmax.f32 %v1109, 1e-06
        %v1624 = vmax.f32 %v1114, 1e-06
        %v1625 = vmax.f32 %v1119, 1e-06
        %v1626 = vmax.f32 %v1124, 1e-06
        %v1627 = vmax.f32 %v1129, 1e-06
        %v1628 = vmax.f32 %v1134, 1e-06
        %v1629 = vmax.f32 %v1139, 1e-06
        %v1630 = vmax.f32 %v1144, 1e-06
        %v1631 = vmax.f32 %v1149, 1e-06
        %v1632 = vmax.f32 %v1154, 1e-06
        %v1633 = vmax.f32 %v1159, 1e-06
        %v1634 = vmax.f32 %v1164, 1e-06
        %v1635 = vmax.f32 %v1169, 1e-06
        %v1636 = vmax.f32 %v1174, 1e-06
        %v1637 = vmax.f32 %v1179, 1e-06
        %v1638 = vmax.f32 %v1184, 1e-06
        %v1639 = vmax.f32 %v1189, 1e-06
        %v1640 = vmax.f32 %v1194, 1e-06
        %v1641 = vmax.f32 %v1199, 1e-06
        %v1642 = vmax.f32 %v1204, 1e-06
        %v1643 = vmax.f32 %v1209, 1e-06
        %v1644 = vmax.f32 %v1214, 1e-06
        %v1645 = vmax.f32 %v1219, 1e-06
        %v1646 = vmax.f32 %v1224, 1e-06
        %v1647 = vmax.f32 %v1229, 1e-06
        %v1648 = vmax.f32 %v1234, 1e-06
        %v1649 = vmax.f32 %v1239, 1e-06
        %v1650 = vmax.f32 %v1244, 1e-06
        %v1651 = vmax.f32 %v1249, 1e-06
        %v1652 = vmax.f32 %v1254, 1e-06
        %v1653 = vmax.f32 %v1259, 1e-06
        %v1654 = vmax.f32 %v1264, 1e-06
        %v1655 = vmax.f32 %v1269, 1e-06
        %v1656 = vmax.f32 %v1274, 1e-06
        %v1657 = vmax.f32 %v1279, 1e-06
        %v1658 = vmax.f32 %v1284, 1e-06
        %v1659 = vmax.f32 %v1289, 1e-06
        %v1660 = vmax.f32 %v1294, 1e-06
        %v1661 = vmax.f32 %v1299, 1e-06
        %v1662 = vmax.f32 %v1304, 1e-06
        %v1663 = vmax.f32 %v1309, 1e-06
        %v1664 = vmax.f32 %v1314, 1e-06
        %v1665 = vmax.f32 %v1319, 1e-06
        %v1666 = vmax.f32 %v1324, 1e-06
        %v1667 = vmax.f32 %v1329, 1e-06
        %v1668 = vmax.f32 %v1334, 1e-06
        %v1669 = vmax.f32 %v1339, 1e-06
        %v1670 = vmax.f32 %v1344, 1e-06
        %v1671 = vmax.f32 %v1349, 1e-06
        %v1672 = vmax.f32 %v1354, 1e-06
        %v1673 = vmax.f32 %v1359, 1e-06
        %v1674 = vmax.f32 %v1364, 1e-06
        %v1675 = vmax.f32 %v1369, 1e-06
        %v1676 = vmax.f32 %v1374, 1e-06
        %v1677 = vmax.f32 %v1379, 1e-06
        %v1678 = vmax.f32 %v1384, 1e-06
        %v1679 = vmax.f32 %v1389, 1e-06
        %v1680 = vmax.f32 %v1394, 1e-06
        %v1681 = vmax.f32 %v1399, 1e-06
        %v1682 = vmax.f32 %v1404, 1e-06
        %v1683 = vmax.f32 %v1409, 1e-06
        %v1684 = vmax.f32 %v1414, 1e-06
        %v1685 = vmax.f32 %v1419, 1e-06
        %v1686 = vmax.f32 %v1424, 1e-06
        %v1687 = vmax.f32 %v1429, 1e-06
        %v1688 = vmax.f32 %v1434, 1e-06
        %v1689 = vmax.f32 %v1439, 1e-06
        %v1690 = vmax.f32 %v1444, 1e-06
        %v1691 = vmax.f32 %v1449, 1e-06
        %v1692 = vmax.f32 %v1454, 1e-06
        %v1693 = vmax.f32 %v1459, 1e-06
        %v1694 = vmax.f32 %v1464, 1e-06
        %v1695 = vmax.f32 %v1469, 1e-06
        %v1696 = vmax.f32 %v1474, 1e-06
        %v1697 = vmax.f32 %v1479, 1e-06
        %v1698 = vmax.f32 %v1484, 1e-06
        %v1699 = vmax.f32 %v1489, 1e-06
        %v1700 = vmax.f32 %v1494, 1e-06
        %v1701 = vmax.f32 %v1499, 1e-06
        %v1702 = vmax.f32 %v1504, 1e-06
        %v1703 = vmax.f32 %v1509, 1e-06
        %v1704 = vmax.f32 %v1514, 1e-06
        %v1705 = vmax.f32 %v1519, 1e-06
        %v1706 = vmax.f32 %v1524, 1e-06
        %v1707 = vmax.f32 %v1529, 1e-06
        %v1708 = vmax.f32 %v1534, 1e-06
        %v1709 = vmax.f32 %v1539, 1e-06
        %v1710 = vmax.f32 %v1544, 1e-06
        %v1711 = vmax.f32 %v1549, 1e-06
        %v1712 = vmax.f32 %v1554, 1e-06
        %v1713 = vmax.f32 %v1559, 1e-06
        %v1714 = vmax.f32 %v1564, 1e-06
        %v1715 = vmax.f32 %v1569, 1e-06
        %v1716 = vmax.f32 %v1574, 1e-06
        %v1717 = vmax.f32 %v1579, 1e-06
        %v1718 = vmax.f32 %v1584, 1e-06
        %v1719 = vmax.f32 %v1589, 1e-06
        %v1720 = vlog2.pop %v1592
        %v1721 = vmul.f32 %v1720, 0.6931472
        %v1722 = vlog2.pop %v1593
        %v1723 = vmul.f32 %v1722, 0.6931472
        %v1724 = vlog2.pop %v1594
        %v1725 = vmul.f32 %v1724, 0.6931472
        %v1726 = vlog2.pop %v1595
        %v1727 = vmul.f32 %v1726, 0.6931472
        %v1728 = vlog2.pop %v1596
        %v1729 = vmul.f32 %v1728, 0.6931472
        %v1730 = vlog2.pop %v1597
        %v1731 = vmul.f32 %v1730, 0.6931472
        %v1732 = vlog2.pop %v1598
        %v1733 = vmul.f32 %v1732, 0.6931472
        %v1734 = vlog2.pop %v1599
        %v1735 = vmul.f32 %v1734, 0.6931472
        %v1736 = vlog2.pop %v1600
        %v1737 = vmul.f32 %v1736, 0.6931472
        %v1738 = vlog2.pop %v1601
        %v1739 = vmul.f32 %v1738, 0.6931472
        %v1740 = vlog2.pop %v1602
        %v1741 = vmul.f32 %v1740, 0.6931472
        %v1742 = vlog2.pop %v1603
        %v1743 = vmul.f32 %v1742, 0.6931472
        %v1744 = vlog2.pop %v1604
        %v1745 = vmul.f32 %v1744, 0.6931472
        %v1746 = vlog2.pop %v1605
        %v1747 = vmul.f32 %v1746, 0.6931472
        %v1748 = vlog2.pop %v1606
        %v1749 = vmul.f32 %v1748, 0.6931472
        %v1750 = vlog2.pop %v1607
        %v1751 = vmul.f32 %v1750, 0.6931472
        %v1752 = vlog2.pop %v1608
        %v1753 = vmul.f32 %v1752, 0.6931472
        %v1754 = vlog2.pop %v1609
        %v1755 = vmul.f32 %v1754, 0.6931472
        %v1756 = vlog2.pop %v1610
        %v1757 = vmul.f32 %v1756, 0.6931472
        %v1758 = vlog2.pop %v1611
        %v1759 = vmul.f32 %v1758, 0.6931472
        %v1760 = vlog2.pop %v1612
        %v1761 = vmul.f32 %v1760, 0.6931472
        %v1762 = vlog2.pop %v1613
        %v1763 = vmul.f32 %v1762, 0.6931472
        %v1764 = vlog2.pop %v1614
        %v1765 = vmul.f32 %v1764, 0.6931472
        %v1766 = vlog2.pop %v1615
        %v1767 = vmul.f32 %v1766, 0.6931472
        %v1768 = vlog2.pop %v1616
        %v1769 = vmul.f32 %v1768, 0.6931472
        %v1770 = vlog2.pop %v1617
        %v1771 = vmul.f32 %v1770, 0.6931472
        %v1772 = vlog2.pop %v1618
        %v1773 = vmul.f32 %v1772, 0.6931472
        %v1774 = vlog2.pop %v1619
        %v1775 = vmul.f32 %v1774, 0.6931472
        %v1776 = vlog2.pop %v1620
        %v1777 = vmul.f32 %v1776, 0.6931472
        %v1778 = vlog2.pop %v1621
        %v1779 = vmul.f32 %v1778, 0.6931472
        %v1780 = vlog2.pop %v1622
        %v1781 = vmul.f32 %v1780, 0.6931472
        %v1782 = vlog2.pop %v1623
        %v1783 = vmul.f32 %v1782, 0.6931472
        %v1784 = vlog2.pop %v1624
        %v1785 = vmul.f32 %v1784, 0.6931472
        %v1786 = vlog2.pop %v1625
        %v1787 = vmul.f32 %v1786, 0.6931472
        %v1788 = vlog2.pop %v1626
        %v1789 = vmul.f32 %v1788, 0.6931472
        %v1790 = vlog2.pop %v1627
        %v1791 = vmul.f32 %v1790, 0.6931472
        %v1792 = vlog2.pop %v1628
        %v1793 = vmul.f32 %v1792, 0.6931472
        %v1794 = vlog2.pop %v1629
        %v1795 = vmul.f32 %v1794, 0.6931472
        %v1796 = vlog2.pop %v1630
        %v1797 = vmul.f32 %v1796, 0.6931472
        %v1798 = vlog2.pop %v1631
        %v1799 = vmul.f32 %v1798, 0.6931472
        %v1800 = vlog2.pop %v1632
        %v1801 = vmul.f32 %v1800, 0.6931472
        %v1802 = vlog2.pop %v1633
        %v1803 = vmul.f32 %v1802, 0.6931472
        %v1804 = vlog2.pop %v1634
        %v1805 = vmul.f32 %v1804, 0.6931472
        %v1806 = vlog2.pop %v1635
        %v1807 = vmul.f32 %v1806, 0.6931472
        %v1808 = vlog2.pop %v1636
        %v1809 = vmul.f32 %v1808, 0.6931472
        %v1810 = vlog2.pop %v1637
        %v1811 = vmul.f32 %v1810, 0.6931472
        %v1812 = vlog2.pop %v1638
        %v1813 = vmul.f32 %v1812, 0.6931472
        %v1814 = vlog2.pop %v1639
        %v1815 = vmul.f32 %v1814, 0.6931472
        %v1816 = vlog2.pop %v1640
        %v1817 = vmul.f32 %v1816, 0.6931472
        %v1818 = vlog2.pop %v1641
        %v1819 = vmul.f32 %v1818, 0.6931472
        %v1820 = vlog2.pop %v1642
        %v1821 = vmul.f32 %v1820, 0.6931472
        %v1822 = vlog2.pop %v1643
        %v1823 = vmul.f32 %v1822, 0.6931472
        %v1824 = vlog2.pop %v1644
        %v1825 = vmul.f32 %v1824, 0.6931472
        %v1826 = vlog2.pop %v1645
        %v1827 = vmul.f32 %v1826, 0.6931472
        %v1828 = vlog2.pop %v1646
        %v1829 = vmul.f32 %v1828, 0.6931472
        %v1830 = vlog2.pop %v1647
        %v1831 = vmul.f32 %v1830, 0.6931472
        %v1832 = vlog2.pop %v1648
        %v1833 = vmul.f32 %v1832, 0.6931472
        %v1834 = vlog2.pop %v1649
        %v1835 = vmul.f32 %v1834, 0.6931472
        %v1836 = vlog2.pop %v1650
        %v1837 = vmul.f32 %v1836, 0.6931472
        %v1838 = vlog2.pop %v1651
        %v1839 = vmul.f32 %v1838, 0.6931472
        %v1840 = vlog2.pop %v1652
        %v1841 = vmul.f32 %v1840, 0.6931472
        %v1842 = vlog2.pop %v1653
        %v1843 = vmul.f32 %v1842, 0.6931472
        %v1844 = vlog2.pop %v1654
        %v1845 = vmul.f32 %v1844, 0.6931472
        %v1846 = vlog2.pop %v1655
        %v1847 = vmul.f32 %v1846, 0.6931472
        %v1848 = vlog2.pop %v1656
        %v1849 = vmul.f32 %v1848, 0.6931472
        %v1850 = vlog2.pop %v1657
        %v1851 = vmul.f32 %v1850, 0.6931472
        %v1852 = vlog2.pop %v1658
        %v1853 = vmul.f32 %v1852, 0.6931472
        %v1854 = vlog2.pop %v1659
        %v1855 = vmul.f32 %v1854, 0.6931472
        %v1856 = vlog2.pop %v1660
        %v1857 = vmul.f32 %v1856, 0.6931472
        %v1858 = vlog2.pop %v1661
        %v1859 = vmul.f32 %v1858, 0.6931472
        %v1860 = vlog2.pop %v1662
        %v1861 = vmul.f32 %v1860, 0.6931472
        %v1862 = vlog2.pop %v1663
        %v1863 = vmul.f32 %v1862, 0.6931472
        %v1864 = vlog2.pop %v1664
        %v1865 = vmul.f32 %v1864, 0.6931472
        %v1866 = vlog2.pop %v1665
        %v1867 = vmul.f32 %v1866, 0.6931472
        %v1868 = vlog2.pop %v1666
        %v1869 = vmul.f32 %v1868, 0.6931472
        %v1870 = vlog2.pop %v1667
        %v1871 = vmul.f32 %v1870, 0.6931472
        %v1872 = vlog2.pop %v1668
        %v1873 = vmul.f32 %v1872, 0.6931472
        %v1874 = vlog2.pop %v1669
        %v1875 = vmul.f32 %v1874, 0.6931472
        %v1876 = vlog2.pop %v1670
        %v1877 = vmul.f32 %v1876, 0.6931472
        %v1878 = vlog2.pop %v1671
        %v1879 = vmul.f32 %v1878, 0.6931472
        %v1880 = vlog2.pop %v1672
        %v1881 = vmul.f32 %v1880, 0.6931472
        %v1882 = vlog2.pop %v1673
        %v1883 = vmul.f32 %v1882, 0.6931472
        %v1884 = vlog2.pop %v1674
        %v1885 = vmul.f32 %v1884, 0.6931472
        %v1886 = vlog2.pop %v1675
        %v1887 = vmul.f32 %v1886, 0.6931472
        %v1888 = vlog2.pop %v1676
        %v1889 = vmul.f32 %v1888, 0.6931472
        %v1890 = vlog2.pop %v1677
        %v1891 = vmul.f32 %v1890, 0.6931472
        %v1892 = vlog2.pop %v1678
        %v1893 = vmul.f32 %v1892, 0.6931472
        %v1894 = vlog2.pop %v1679
        %v1895 = vmul.f32 %v1894, 0.6931472
        %v1896 = vlog2.pop %v1680
        %v1897 = vmul.f32 %v1896, 0.6931472
        %v1898 = vlog2.pop %v1681
        %v1899 = vmul.f32 %v1898, 0.6931472
        %v1900 = vlog2.pop %v1682
        %v1901 = vmul.f32 %v1900, 0.6931472
        %v1902 = vlog2.pop %v1683
        %v1903 = vmul.f32 %v1902, 0.6931472
        %v1904 = vlog2.pop %v1684
        %v1905 = vmul.f32 %v1904, 0.6931472
        %v1906 = vlog2.pop %v1685
        %v1907 = vmul.f32 %v1906, 0.6931472
        %v1908 = vlog2.pop %v1686
        %v1909 = vmul.f32 %v1908, 0.6931472
        %v1910 = vlog2.pop %v1687
        %v1911 = vmul.f32 %v1910, 0.6931472
        %v1912 = vlog2.pop %v1688
        %v1913 = vmul.f32 %v1912, 0.6931472
        %v1914 = vlog2.pop %v1689
        %v1915 = vmul.f32 %v1914, 0.6931472
        %v1916 = vlog2.pop %v1690
        %v1917 = vmul.f32 %v1916, 0.6931472
        %v1918 = vlog2.pop %v1691
        %v1919 = vmul.f32 %v1918, 0.6931472
        %v1920 = vlog2.pop %v1692
        %v1921 = vmul.f32 %v1920, 0.6931472
        %v1922 = vlog2.pop %v1693
        %v1923 = vmul.f32 %v1922, 0.6931472
        %v1924 = vlog2.pop %v1694
        %v1925 = vmul.f32 %v1924, 0.6931472
        %v1926 = vlog2.pop %v1695
        %v1927 = vmul.f32 %v1926, 0.6931472
        %v1928 = vlog2.pop %v1696
        %v1929 = vmul.f32 %v1928, 0.6931472
        %v1930 = vlog2.pop %v1697
        %v1931 = vmul.f32 %v1930, 0.6931472
        %v1932 = vlog2.pop %v1698
        %v1933 = vmul.f32 %v1932, 0.6931472
        %v1934 = vlog2.pop %v1699
        %v1935 = vmul.f32 %v1934, 0.6931472
        %v1936 = vlog2.pop %v1700
        %v1937 = vmul.f32 %v1936, 0.6931472
        %v1938 = vlog2.pop %v1701
        %v1939 = vmul.f32 %v1938, 0.6931472
        %v1940 = vlog2.pop %v1702
        %v1941 = vmul.f32 %v1940, 0.6931472
        %v1942 = vlog2.pop %v1703
        %v1943 = vmul.f32 %v1942, 0.6931472
        %v1944 = vlog2.pop %v1704
        %v1945 = vmul.f32 %v1944, 0.6931472
        %v1946 = vlog2.pop %v1705
        %v1947 = vmul.f32 %v1946, 0.6931472
        %v1948 = vlog2.pop %v1706
        %v1949 = vmul.f32 %v1948, 0.6931472
        %v1950 = vlog2.pop %v1707
        %v1951 = vmul.f32 %v1950, 0.6931472
        %v1952 = vlog2.pop %v1708
        %v1953 = vmul.f32 %v1952, 0.6931472
        %v1954 = vlog2.pop %v1709
        %v1955 = vmul.f32 %v1954, 0.6931472
        %v1956 = vlog2.pop %v1710
        %v1957 = vmul.f32 %v1956, 0.6931472
        %v1958 = vlog2.pop %v1711
        %v1959 = vmul.f32 %v1958, 0.6931472
        %v1960 = vlog2.pop %v1712
        %v1961 = vmul.f32 %v1960, 0.6931472
        %v1962 = vlog2.pop %v1713
        %v1963 = vmul.f32 %v1962, 0.6931472
        %v1964 = vlog2.pop %v1714
        %v1965 = vmul.f32 %v1964, 0.6931472
        %v1966 = vlog2.pop %v1715
        %v1967 = vmul.f32 %v1966, 0.6931472
        %v1968 = vlog2.pop %v1716
        %v1969 = vmul.f32 %v1968, 0.6931472
        %v1970 = vlog2.pop %v1717
        %v1971 = vmul.f32 %v1970, 0.6931472
        %v1972 = vlog2.pop %v1718
        %v1973 = vmul.f32 %v1972, 0.6931472
        %v1974 = vlog2.pop %v1719
        %v1975 = vmul.f32 %v1974, 0.6931472
        %v1976 = vstv %s486
        %v1977 = vmul.f32 %v1976, %v1721
        %v1978 = vmul.f32 %v1976, %v1723
        %v1979 = vmul.f32 %v1976, %v1725
        %v1980 = vmul.f32 %v1976, %v1727
        %v1981 = vmul.f32 %v1976, %v1729
        %v1982 = vmul.f32 %v1976, %v1731
        %v1983 = vmul.f32 %v1976, %v1733
        %v1984 = vmul.f32 %v1976, %v1735
        %v1985 = vmul.f32 %v1976, %v1737
        %v1986 = vmul.f32 %v1976, %v1739
        %v1987 = vmul.f32 %v1976, %v1741
        %v1988 = vmul.f32 %v1976, %v1743
        %v1989 = vmul.f32 %v1976, %v1745
        %v1990 = vmul.f32 %v1976, %v1747
        %v1991 = vmul.f32 %v1976, %v1749
        %v1992 = vmul.f32 %v1976, %v1751
        %v1993 = vmul.f32 %v1976, %v1753
        %v1994 = vmul.f32 %v1976, %v1755
        %v1995 = vmul.f32 %v1976, %v1757
        %v1996 = vmul.f32 %v1976, %v1759
        %v1997 = vmul.f32 %v1976, %v1761
        %v1998 = vmul.f32 %v1976, %v1763
        %v1999 = vmul.f32 %v1976, %v1765
        %v2000 = vmul.f32 %v1976, %v1767
        %v2001 = vmul.f32 %v1976, %v1769
        %v2002 = vmul.f32 %v1976, %v1771
        %v2003 = vmul.f32 %v1976, %v1773
        %v2004 = vmul.f32 %v1976, %v1775
        %v2005 = vmul.f32 %v1976, %v1777
        %v2006 = vmul.f32 %v1976, %v1779
        %v2007 = vmul.f32 %v1976, %v1781
        %v2008 = vmul.f32 %v1976, %v1783
        %v2009 = vmul.f32 %v1976, %v1785
        %v2010 = vmul.f32 %v1976, %v1787
        %v2011 = vmul.f32 %v1976, %v1789
        %v2012 = vmul.f32 %v1976, %v1791
        %v2013 = vmul.f32 %v1976, %v1793
        %v2014 = vmul.f32 %v1976, %v1795
        %v2015 = vmul.f32 %v1976, %v1797
        %v2016 = vmul.f32 %v1976, %v1799
        %v2017 = vmul.f32 %v1976, %v1801
        %v2018 = vmul.f32 %v1976, %v1803
        %v2019 = vmul.f32 %v1976, %v1805
        %v2020 = vmul.f32 %v1976, %v1807
        %v2021 = vmul.f32 %v1976, %v1809
        %v2022 = vmul.f32 %v1976, %v1811
        %v2023 = vmul.f32 %v1976, %v1813
        %v2024 = vmul.f32 %v1976, %v1815
        %v2025 = vmul.f32 %v1976, %v1817
        %v2026 = vmul.f32 %v1976, %v1819
        %v2027 = vmul.f32 %v1976, %v1821
        %v2028 = vmul.f32 %v1976, %v1823
        %v2029 = vmul.f32 %v1976, %v1825
        %v2030 = vmul.f32 %v1976, %v1827
        %v2031 = vmul.f32 %v1976, %v1829
        %v2032 = vmul.f32 %v1976, %v1831
        %v2033 = vmul.f32 %v1976, %v1833
        %v2034 = vmul.f32 %v1976, %v1835
        %v2035 = vmul.f32 %v1976, %v1837
        %v2036 = vmul.f32 %v1976, %v1839
        %v2037 = vmul.f32 %v1976, %v1841
        %v2038 = vmul.f32 %v1976, %v1843
        %v2039 = vmul.f32 %v1976, %v1845
        %v2040 = vmul.f32 %v1976, %v1847
        %v2041 = vmul.f32 %v1976, %v1849
        %v2042 = vmul.f32 %v1976, %v1851
        %v2043 = vmul.f32 %v1976, %v1853
        %v2044 = vmul.f32 %v1976, %v1855
        %v2045 = vmul.f32 %v1976, %v1857
        %v2046 = vmul.f32 %v1976, %v1859
        %v2047 = vmul.f32 %v1976, %v1861
        %v2048 = vmul.f32 %v1976, %v1863
        %v2049 = vmul.f32 %v1976, %v1865
        %v2050 = vmul.f32 %v1976, %v1867
        %v2051 = vmul.f32 %v1976, %v1869
        %v2052 = vmul.f32 %v1976, %v1871
        %v2053 = vmul.f32 %v1976, %v1873
        %v2054 = vmul.f32 %v1976, %v1875
        %v2055 = vmul.f32 %v1976, %v1877
        %v2056 = vmul.f32 %v1976, %v1879
        %v2057 = vmul.f32 %v1976, %v1881
        %v2058 = vmul.f32 %v1976, %v1883
        %v2059 = vmul.f32 %v1976, %v1885
        %v2060 = vmul.f32 %v1976, %v1887
        %v2061 = vmul.f32 %v1976, %v1889
        %v2062 = vmul.f32 %v1976, %v1891
        %v2063 = vmul.f32 %v1976, %v1893
        %v2064 = vmul.f32 %v1976, %v1895
        %v2065 = vmul.f32 %v1976, %v1897
        %v2066 = vmul.f32 %v1976, %v1899
        %v2067 = vmul.f32 %v1976, %v1901
        %v2068 = vmul.f32 %v1976, %v1903
        %v2069 = vmul.f32 %v1976, %v1905
        %v2070 = vmul.f32 %v1976, %v1907
        %v2071 = vmul.f32 %v1976, %v1909
        %v2072 = vmul.f32 %v1976, %v1911
        %v2073 = vmul.f32 %v1976, %v1913
        %v2074 = vmul.f32 %v1976, %v1915
        %v2075 = vmul.f32 %v1976, %v1917
        %v2076 = vmul.f32 %v1976, %v1919
        %v2077 = vmul.f32 %v1976, %v1921
        %v2078 = vmul.f32 %v1976, %v1923
        %v2079 = vmul.f32 %v1976, %v1925
        %v2080 = vmul.f32 %v1976, %v1927
        %v2081 = vmul.f32 %v1976, %v1929
        %v2082 = vmul.f32 %v1976, %v1931
        %v2083 = vmul.f32 %v1976, %v1933
        %v2084 = vmul.f32 %v1976, %v1935
        %v2085 = vmul.f32 %v1976, %v1937
        %v2086 = vmul.f32 %v1976, %v1939
        %v2087 = vmul.f32 %v1976, %v1941
        %v2088 = vmul.f32 %v1976, %v1943
        %v2089 = vmul.f32 %v1976, %v1945
        %v2090 = vmul.f32 %v1976, %v1947
        %v2091 = vmul.f32 %v1976, %v1949
        %v2092 = vmul.f32 %v1976, %v1951
        %v2093 = vmul.f32 %v1976, %v1953
        %v2094 = vmul.f32 %v1976, %v1955
        %v2095 = vmul.f32 %v1976, %v1957
        %v2096 = vmul.f32 %v1976, %v1959
        %v2097 = vmul.f32 %v1976, %v1961
        %v2098 = vmul.f32 %v1976, %v1963
        %v2099 = vmul.f32 %v1976, %v1965
        %v2100 = vmul.f32 %v1976, %v1967
        %v2101 = vmul.f32 %v1976, %v1969
        %v2102 = vmul.f32 %v1976, %v1971
        %v2103 = vmul.f32 %v1976, %v1973
        %v2104 = vmul.f32 %v1976, %v1975
        %v2105 = vmul.f32 %v1977, 1.442695
        %v2106 = vpow.pop %v2105
        %v2107 = vmul.f32 %v1978, 1.442695
        %v2108 = vpow.pop %v2107
        %v2109 = vmul.f32 %v1979, 1.442695
        %v2110 = vpow.pop %v2109
        %v2111 = vmul.f32 %v1980, 1.442695
        %v2112 = vpow.pop %v2111
        %v2113 = vmul.f32 %v1981, 1.442695
        %v2114 = vpow.pop %v2113
        %v2115 = vmul.f32 %v1982, 1.442695
        %v2116 = vpow.pop %v2115
        %v2117 = vmul.f32 %v1983, 1.442695
        %v2118 = vpow.pop %v2117
        %v2119 = vmul.f32 %v1984, 1.442695
        %v2120 = vpow.pop %v2119
        %v2121 = vmul.f32 %v1985, 1.442695
        %v2122 = vpow.pop %v2121
        %v2123 = vmul.f32 %v1986, 1.442695
        %v2124 = vpow.pop %v2123
        %v2125 = vmul.f32 %v1987, 1.442695
        %v2126 = vpow.pop %v2125
        %v2127 = vmul.f32 %v1988, 1.442695
        %v2128 = vpow.pop %v2127
        %v2129 = vmul.f32 %v1989, 1.442695
        %v2130 = vpow.pop %v2129
        %v2131 = vmul.f32 %v1990, 1.442695
        %v2132 = vpow.pop %v2131
        %v2133 = vmul.f32 %v1991, 1.442695
        %v2134 = vpow.pop %v2133
        %v2135 = vmul.f32 %v1992, 1.442695
        %v2136 = vpow.pop %v2135
        %v2137 = vmul.f32 %v1993, 1.442695
        %v2138 = vpow.pop %v2137
        %v2139 = vmul.f32 %v1994, 1.442695
        %v2140 = vpow.pop %v2139
        %v2141 = vmul.f32 %v1995, 1.442695
        %v2142 = vpow.pop %v2141
        %v2143 = vmul.f32 %v1996, 1.442695
        %v2144 = vpow.pop %v2143
        %v2145 = vmul.f32 %v1997, 1.442695
        %v2146 = vpow.pop %v2145
        %v2147 = vmul.f32 %v1998, 1.442695
        %v2148 = vpow.pop %v2147
        %v2149 = vmul.f32 %v1999, 1.442695
        %v2150 = vpow.pop %v2149
        %v2151 = vmul.f32 %v2000, 1.442695
        %v2152 = vpow.pop %v2151
        %v2153 = vmul.f32 %v2001, 1.442695
        %v2154 = vpow.pop %v2153
        %v2155 = vmul.f32 %v2002, 1.442695
        %v2156 = vpow.pop %v2155
        %v2157 = vmul.f32 %v2003, 1.442695
        %v2158 = vpow.pop %v2157
        %v2159 = vmul.f32 %v2004, 1.442695
        %v2160 = vpow.pop %v2159
        %v2161 = vmul.f32 %v2005, 1.442695
        %v2162 = vpow.pop %v2161
        %v2163 = vmul.f32 %v2006, 1.442695
        %v2164 = vpow.pop %v2163
        %v2165 = vmul.f32 %v2007, 1.442695
        %v2166 = vpow.pop %v2165
        %v2167 = vmul.f32 %v2008, 1.442695
        %v2168 = vpow.pop %v2167
        %v2169 = vmul.f32 %v2009, 1.442695
        %v2170 = vpow.pop %v2169
        %v2171 = vmul.f32 %v2010, 1.442695
        %v2172 = vpow.pop %v2171
        %v2173 = vmul.f32 %v2011, 1.442695
        %v2174 = vpow.pop %v2173
        %v2175 = vmul.f32 %v2012, 1.442695
        %v2176 = vpow.pop %v2175
        %v2177 = vmul.f32 %v2013, 1.442695
        %v2178 = vpow.pop %v2177
        %v2179 = vmul.f32 %v2014, 1.442695
        %v2180 = vpow.pop %v2179
        %v2181 = vmul.f32 %v2015, 1.442695
        %v2182 = vpow.pop %v2181
        %v2183 = vmul.f32 %v2016, 1.442695
        %v2184 = vpow.pop %v2183
        %v2185 = vmul.f32 %v2017, 1.442695
        %v2186 = vpow.pop %v2185
        %v2187 = vmul.f32 %v2018, 1.442695
        %v2188 = vpow.pop %v2187
        %v2189 = vmul.f32 %v2019, 1.442695
        %v2190 = vpow.pop %v2189
        %v2191 = vmul.f32 %v2020, 1.442695
        %v2192 = vpow.pop %v2191
        %v2193 = vmul.f32 %v2021, 1.442695
        %v2194 = vpow.pop %v2193
        %v2195 = vmul.f32 %v2022, 1.442695
        %v2196 = vpow.pop %v2195
        %v2197 = vmul.f32 %v2023, 1.442695
        %v2198 = vpow.pop %v2197
        %v2199 = vmul.f32 %v2024, 1.442695
        %v2200 = vpow.pop %v2199
        %v2201 = vmul.f32 %v2025, 1.442695
        %v2202 = vpow.pop %v2201
        %v2203 = vmul.f32 %v2026, 1.442695
        %v2204 = vpow.pop %v2203
        %v2205 = vmul.f32 %v2027, 1.442695
        %v2206 = vpow.pop %v2205
        %v2207 = vmul.f32 %v2028, 1.442695
        %v2208 = vpow.pop %v2207
        %v2209 = vmul.f32 %v2029, 1.442695
        %v2210 = vpow.pop %v2209
        %v2211 = vmul.f32 %v2030, 1.442695
        %v2212 = vpow.pop %v2211
        %v2213 = vmul.f32 %v2031, 1.442695
        %v2214 = vpow.pop %v2213
        %v2215 = vmul.f32 %v2032, 1.442695
        %v2216 = vpow.pop %v2215
        %v2217 = vmul.f32 %v2033, 1.442695
        %v2218 = vpow.pop %v2217
        %v2219 = vmul.f32 %v2034, 1.442695
        %v2220 = vpow.pop %v2219
        %v2221 = vmul.f32 %v2035, 1.442695
        %v2222 = vpow.pop %v2221
        %v2223 = vmul.f32 %v2036, 1.442695
        %v2224 = vpow.pop %v2223
        %v2225 = vmul.f32 %v2037, 1.442695
        %v2226 = vpow.pop %v2225
        %v2227 = vmul.f32 %v2038, 1.442695
        %v2228 = vpow.pop %v2227
        %v2229 = vmul.f32 %v2039, 1.442695
        %v2230 = vpow.pop %v2229
        %v2231 = vmul.f32 %v2040, 1.442695
        %v2232 = vpow.pop %v2231
        %v2233 = vmul.f32 %v2041, 1.442695
        %v2234 = vpow.pop %v2233
        %v2235 = vmul.f32 %v2042, 1.442695
        %v2236 = vpow.pop %v2235
        %v2237 = vmul.f32 %v2043, 1.442695
        %v2238 = vpow.pop %v2237
        %v2239 = vmul.f32 %v2044, 1.442695
        %v2240 = vpow.pop %v2239
        %v2241 = vmul.f32 %v2045, 1.442695
        %v2242 = vpow.pop %v2241
        %v2243 = vmul.f32 %v2046, 1.442695
        %v2244 = vpow.pop %v2243
        %v2245 = vmul.f32 %v2047, 1.442695
        %v2246 = vpow.pop %v2245
        %v2247 = vmul.f32 %v2048, 1.442695
        %v2248 = vpow.pop %v2247
        %v2249 = vmul.f32 %v2049, 1.442695
        %v2250 = vpow.pop %v2249
        %v2251 = vmul.f32 %v2050, 1.442695
        %v2252 = vpow.pop %v2251
        %v2253 = vmul.f32 %v2051, 1.442695
        %v2254 = vpow.pop %v2253
        %v2255 = vmul.f32 %v2052, 1.442695
        %v2256 = vpow.pop %v2255
        %v2257 = vmul.f32 %v2053, 1.442695
        %v2258 = vpow.pop %v2257
        %v2259 = vmul.f32 %v2054, 1.442695
        %v2260 = vpow.pop %v2259
        %v2261 = vmul.f32 %v2055, 1.442695
        %v2262 = vpow.pop %v2261
        %v2263 = vmul.f32 %v2056, 1.442695
        %v2264 = vpow.pop %v2263
        %v2265 = vmul.f32 %v2057, 1.442695
        %v2266 = vpow.pop %v2265
        %v2267 = vmul.f32 %v2058, 1.442695
        %v2268 = vpow.pop %v2267
        %v2269 = vmul.f32 %v2059, 1.442695
        %v2270 = vpow.pop %v2269
        %v2271 = vmul.f32 %v2060, 1.442695
        %v2272 = vpow.pop %v2271
        %v2273 = vmul.f32 %v2061, 1.442695
        %v2274 = vpow.pop %v2273
        %v2275 = vmul.f32 %v2062, 1.442695
        %v2276 = vpow.pop %v2275
        %v2277 = vmul.f32 %v2063, 1.442695
        %v2278 = vpow.pop %v2277
        %v2279 = vmul.f32 %v2064, 1.442695
        %v2280 = vpow.pop %v2279
        %v2281 = vmul.f32 %v2065, 1.442695
        %v2282 = vpow.pop %v2281
        %v2283 = vmul.f32 %v2066, 1.442695
        %v2284 = vpow.pop %v2283
        %v2285 = vmul.f32 %v2067, 1.442695
        %v2286 = vpow.pop %v2285
        %v2287 = vmul.f32 %v2068, 1.442695
        %v2288 = vpow.pop %v2287
        %v2289 = vmul.f32 %v2069, 1.442695
        %v2290 = vpow.pop %v2289
        %v2291 = vmul.f32 %v2070, 1.442695
        %v2292 = vpow.pop %v2291
        %v2293 = vmul.f32 %v2071, 1.442695
        %v2294 = vpow.pop %v2293
        %v2295 = vmul.f32 %v2072, 1.442695
        %v2296 = vpow.pop %v2295
        %v2297 = vmul.f32 %v2073, 1.442695
        %v2298 = vpow.pop %v2297
        %v2299 = vmul.f32 %v2074, 1.442695
        %v2300 = vpow.pop %v2299
        %v2301 = vmul.f32 %v2075, 1.442695
        %v2302 = vpow.pop %v2301
        %v2303 = vmul.f32 %v2076, 1.442695
        %v2304 = vpow.pop %v2303
        %v2305 = vmul.f32 %v2077, 1.442695
        %v2306 = vpow.pop %v2305
        %v2307 = vmul.f32 %v2078, 1.442695
        %v2308 = vpow.pop %v2307
        %v2309 = vmul.f32 %v2079, 1.442695
        %v2310 = vpow.pop %v2309
        %v2311 = vmul.f32 %v2080, 1.442695
        %v2312 = vpow.pop %v2311
        %v2313 = vmul.f32 %v2081, 1.442695
        %v2314 = vpow.pop %v2313
        %v2315 = vmul.f32 %v2082, 1.442695
        %v2316 = vpow.pop %v2315
        %v2317 = vmul.f32 %v2083, 1.442695
        %v2318 = vpow.pop %v2317
        %v2319 = vmul.f32 %v2084, 1.442695
        %v2320 = vpow.pop %v2319
        %v2321 = vmul.f32 %v2085, 1.442695
        %v2322 = vpow.pop %v2321
        %v2323 = vmul.f32 %v2086, 1.442695
        %v2324 = vpow.pop %v2323
        %v2325 = vmul.f32 %v2087, 1.442695
        %v2326 = vpow.pop %v2325
        %v2327 = vmul.f32 %v2088, 1.442695
        %v2328 = vpow.pop %v2327
        %v2329 = vmul.f32 %v2089, 1.442695
        %v2330 = vpow.pop %v2329
        %v2331 = vmul.f32 %v2090, 1.442695
        %v2332 = vpow.pop %v2331
        %v2333 = vmul.f32 %v2091, 1.442695
        %v2334 = vpow.pop %v2333
        %v2335 = vmul.f32 %v2092, 1.442695
        %v2336 = vpow.pop %v2335
        %v2337 = vmul.f32 %v2093, 1.442695
        %v2338 = vpow.pop %v2337
        %v2339 = vmul.f32 %v2094, 1.442695
        %v2340 = vpow.pop %v2339
        %v2341 = vmul.f32 %v2095, 1.442695
        %v2342 = vpow.pop %v2341
        %v2343 = vmul.f32 %v2096, 1.442695
        %v2344 = vpow.pop %v2343
        %v2345 = vmul.f32 %v2097, 1.442695
        %v2346 = vpow.pop %v2345
        %v2347 = vmul.f32 %v2098, 1.442695
        %v2348 = vpow.pop %v2347
        %v2349 = vmul.f32 %v2099, 1.442695
        %v2350 = vpow.pop %v2349
        %v2351 = vmul.f32 %v2100, 1.442695
        %v2352 = vpow.pop %v2351
        %v2353 = vmul.f32 %v2101, 1.442695
        %v2354 = vpow.pop %v2353
        %v2355 = vmul.f32 %v2102, 1.442695
        %v2356 = vpow.pop %v2355
        %v2357 = vmul.f32 %v2103, 1.442695
        %v2358 = vpow.pop %v2357
        %v2359 = vmul.f32 %v2104, 1.442695
        %v2360 = vpow.pop %v2359
        %2361 = vmatprep.subr.mxu0 0.0
        %2362 = vmatpush1.msra.mxu0 %v2136
        %2363 = vmatprep.subr.mxu0 0.0
        %2364 = vmatpush1.msra.mxu0 %v2134
        %2365 = vmatprep.subr.mxu0 0.0
        %2366 = vmatpush1.msra.mxu0 %v2132
        %2367 = vmatprep.subr.mxu0 0.0
        %2368 = vmatpush1.msra.mxu0 %v2130
        %2369 = vmatprep.subr.mxu0 0.0
        %2370 = vmatpush1.msra.mxu0 %v2128
        %2371 = vmatprep.subr.mxu0 0.0
        %2372 = vmatpush1.msra.mxu0 %v2126
        %2373 = vmatprep.subr.mxu0 0.0
        %2374 = vmatpush1.msra.mxu0 %v2124
        %2375 = vmatprep.subr.mxu0 0.0
        %2376 = vmatpush1.msra.mxu0 %v2122
        %2377 = vmatprep.subr.mxu0 0.0
        %2378 = vmatpush1.msra.mxu0 %v2120
        %2379 = vmatprep.subr.mxu0 0.0
        %2380 = vmatpush1.msra.mxu0 %v2118
        %2381 = vmatprep.subr.mxu0 0.0
        %2382 = vmatpush1.msra.mxu0 %v2116
        %2383 = vmatprep.subr.mxu0 0.0
        %2384 = vmatpush1.msra.mxu0 %v2114
        %2385 = vmatprep.subr.mxu0 0.0
        %2386 = vmatpush1.msra.mxu0 %v2112
        %2387 = vmatprep.subr.mxu0 0.0
        %2388 = vmatpush1.msra.mxu0 %v2110
        %2389 = vmatprep.subr.mxu0 0.0
        %2390 = vmatpush1.msra.mxu0 %v2108
        %2391 = vmatprep.subr.mxu0 0.0
        %2392 = vmatpush1.msra.mxu0 %v2106
        %2393 = vmatprep.subr.mxu0 0.0
        %2394 = vmatpush2.msra.mxu0 %v2168
        %2395 = vmatprep.subr.mxu0 0.0
        %2396 = vmatpush2.msra.mxu0 %v2166
        %2397 = vmatprep.subr.mxu0 0.0
        %2398 = vmatpush2.msra.mxu0 %v2164
        %2399 = vmatprep.subr.mxu0 0.0
        %2400 = vmatpush2.msra.mxu0 %v2162
        %2401 = vmatprep.subr.mxu0 0.0
        %2402 = vmatpush2.msra.mxu0 %v2160
        %2403 = vmatprep.subr.mxu0 0.0
        %2404 = vmatpush2.msra.mxu0 %v2158
        %2405 = vmatprep.subr.mxu0 0.0
        %2406 = vmatpush2.msra.mxu0 %v2156
        %2407 = vmatprep.subr.mxu0 0.0
        %2408 = vmatpush2.msra.mxu0 %v2154
        %2409 = vmatprep.subr.mxu0 0.0
        %2410 = vmatpush2.msra.mxu0 %v2152
        %2411 = vmatprep.subr.mxu0 0.0
        %2412 = vmatpush2.msra.mxu0 %v2150
        %2413 = vmatprep.subr.mxu0 0.0
        %2414 = vmatpush2.msra.mxu0 %v2148
        %2415 = vmatprep.subr.mxu0 0.0
        %2416 = vmatpush2.msra.mxu0 %v2146
        %2417 = vmatprep.subr.mxu0 0.0
        %2418 = vmatpush2.msra.mxu0 %v2144
        %2419 = vmatprep.subr.mxu0 0.0
        %2420 = vmatpush2.msra.mxu0 %v2142
        %2421 = vmatprep.subr.mxu0 0.0
        %2422 = vmatpush2.msra.mxu0 %v2140
        %2423 = vmatprep.subr.mxu0 0.0
        %2424 = vmatpush2.msra.mxu0 %v2138
        %2425 = vmatprep.mubr.f32.mxu0 1.0
        %2426 = vmatmul.mubr.f32.gmra.mxu0 1.0
        %v2427 = vpop.f32.mrf.mxu0
        %v2428 = vadd.f32 0.0, %v2427
        %v2429 = vpop.f32.mrf.mxu0
        %2430 = vdwg.mxu0
        %2431 = vmatprep.subr.mxu0 0.0
        %2432 = vmatpush1.msra.mxu0 %v2200
        %2433 = vmatprep.subr.mxu0 0.0
        %2434 = vmatpush1.msra.mxu0 %v2198
        %2435 = vmatprep.subr.mxu0 0.0
        %2436 = vmatpush1.msra.mxu0 %v2196
        %2437 = vmatprep.subr.mxu0 0.0
        %2438 = vmatpush1.msra.mxu0 %v2194
        %2439 = vmatprep.subr.mxu0 0.0
        %2440 = vmatpush1.msra.mxu0 %v2192
        %2441 = vmatprep.subr.mxu0 0.0
        %2442 = vmatpush1.msra.mxu0 %v2190
        %2443 = vmatprep.subr.mxu0 0.0
        %2444 = vmatpush1.msra.mxu0 %v2188
        %2445 = vmatprep.subr.mxu0 0.0
        %2446 = vmatpush1.msra.mxu0 %v2186
        %2447 = vmatprep.subr.mxu0 0.0
        %2448 = vmatpush1.msra.mxu0 %v2184
        %2449 = vmatprep.subr.mxu0 0.0
        %2450 = vmatpush1.msra.mxu0 %v2182
        %2451 = vmatprep.subr.mxu0 0.0
        %2452 = vmatpush1.msra.mxu0 %v2180
        %2453 = vmatprep.subr.mxu0 0.0
        %2454 = vmatpush1.msra.mxu0 %v2178
        %2455 = vmatprep.subr.mxu0 0.0
        %2456 = vmatpush1.msra.mxu0 %v2176
        %2457 = vmatprep.subr.mxu0 0.0
        %2458 = vmatpush1.msra.mxu0 %v2174
        %2459 = vmatprep.subr.mxu0 0.0
        %2460 = vmatpush1.msra.mxu0 %v2172
        %2461 = vmatprep.subr.mxu0 0.0
        %2462 = vmatpush1.msra.mxu0 %v2170
        %2463 = vmatprep.subr.mxu0 0.0
        %2464 = vmatpush2.msra.mxu0 %v2232
        %2465 = vmatprep.subr.mxu0 0.0
        %2466 = vmatpush2.msra.mxu0 %v2230
        %2467 = vmatprep.subr.mxu0 0.0
        %2468 = vmatpush2.msra.mxu0 %v2228
        %2469 = vmatprep.subr.mxu0 0.0
        %2470 = vmatpush2.msra.mxu0 %v2226
        %2471 = vmatprep.subr.mxu0 0.0
        %2472 = vmatpush2.msra.mxu0 %v2224
        %2473 = vmatprep.subr.mxu0 0.0
        %2474 = vmatpush2.msra.mxu0 %v2222
        %2475 = vmatprep.subr.mxu0 0.0
        %2476 = vmatpush2.msra.mxu0 %v2220
        %2477 = vmatprep.subr.mxu0 0.0
        %2478 = vmatpush2.msra.mxu0 %v2218
        %2479 = vmatprep.subr.mxu0 0.0
        %2480 = vmatpush2.msra.mxu0 %v2216
        %2481 = vmatprep.subr.mxu0 0.0
        %2482 = vmatpush2.msra.mxu0 %v2214
        %2483 = vmatprep.subr.mxu0 0.0
        %2484 = vmatpush2.msra.mxu0 %v2212
        %2485 = vmatprep.subr.mxu0 0.0
        %2486 = vmatpush2.msra.mxu0 %v2210
        %2487 = vmatprep.subr.mxu0 0.0
        %2488 = vmatpush2.msra.mxu0 %v2208
        %2489 = vmatprep.subr.mxu0 0.0
        %2490 = vmatpush2.msra.mxu0 %v2206
        %2491 = vmatprep.subr.mxu0 0.0
        %2492 = vmatpush2.msra.mxu0 %v2204
        %2493 = vmatprep.subr.mxu0 0.0
        %2494 = vmatpush2.msra.mxu0 %v2202
        %2495 = vmatprep.mubr.f32.mxu0 1.0
        %2496 = vmatmul.mubr.f32.gmra.mxu0 1.0
        %v2497 = vpop.f32.mrf.mxu0
        %v2498 = vadd.f32 %v2428, %v2497
        %v2499 = vpop.f32.mrf.mxu0
        %2500 = vdwg.mxu0
        %2501 = vmatprep.subr.mxu0 0.0
        %2502 = vmatpush1.msra.mxu0 %v2264
        %2503 = vmatprep.subr.mxu0 0.0
        %2504 = vmatpush1.msra.mxu0 %v2262
        %2505 = vmatprep.subr.mxu0 0.0
        %2506 = vmatpush1.msra.mxu0 %v2260
        %2507 = vmatprep.subr.mxu0 0.0
        %2508 = vmatpush1.msra.mxu0 %v2258
        %2509 = vmatprep.subr.mxu0 0.0
        %2510 = vmatpush1.msra.mxu0 %v2256
        %2511 = vmatprep.subr.mxu0 0.0
        %2512 = vmatpush1.msra.mxu0 %v2254
        %2513 = vmatprep.subr.mxu0 0.0
        %2514 = vmatpush1.msra.mxu0 %v2252
        %2515 = vmatprep.subr.mxu0 0.0
        %2516 = vmatpush1.msra.mxu0 %v2250
        %2517 = vmatprep.subr.mxu0 0.0
        %2518 = vmatpush1.msra.mxu0 %v2248
        %2519 = vmatprep.subr.mxu0 0.0
        %2520 = vmatpush1.msra.mxu0 %v2246
        %2521 = vmatprep.subr.mxu0 0.0
        %2522 = vmatpush1.msra.mxu0 %v2244
        %2523 = vmatprep.subr.mxu0 0.0
        %2524 = vmatpush1.msra.mxu0 %v2242
        %2525 = vmatprep.subr.mxu0 0.0
        %2526 = vmatpush1.msra.mxu0 %v2240
        %2527 = vmatprep.subr.mxu0 0.0
        %2528 = vmatpush1.msra.mxu0 %v2238
        %2529 = vmatprep.subr.mxu0 0.0
        %2530 = vmatpush1.msra.mxu0 %v2236
        %2531 = vmatprep.subr.mxu0 0.0
        %2532 = vmatpush1.msra.mxu0 %v2234
        %2533 = vmatprep.subr.mxu0 0.0
        %2534 = vmatpush2.msra.mxu0 %v2296
        %2535 = vmatprep.subr.mxu0 0.0
        %2536 = vmatpush2.msra.mxu0 %v2294
        %2537 = vmatprep.subr.mxu0 0.0
        %2538 = vmatpush2.msra.mxu0 %v2292
        %2539 = vmatprep.subr.mxu0 0.0
        %2540 = vmatpush2.msra.mxu0 %v2290
        %2541 = vmatprep.subr.mxu0 0.0
        %2542 = vmatpush2.msra.mxu0 %v2288
        %2543 = vmatprep.subr.mxu0 0.0
        %2544 = vmatpush2.msra.mxu0 %v2286
        %2545 = vmatprep.subr.mxu0 0.0
        %2546 = vmatpush2.msra.mxu0 %v2284
        %2547 = vmatprep.subr.mxu0 0.0
        %2548 = vmatpush2.msra.mxu0 %v2282
        %2549 = vmatprep.subr.mxu0 0.0
        %2550 = vmatpush2.msra.mxu0 %v2280
        %2551 = vmatprep.subr.mxu0 0.0
        %2552 = vmatpush2.msra.mxu0 %v2278
        %2553 = vmatprep.subr.mxu0 0.0
        %2554 = vmatpush2.msra.mxu0 %v2276
        %2555 = vmatprep.subr.mxu0 0.0
        %2556 = vmatpush2.msra.mxu0 %v2274
        %2557 = vmatprep.subr.mxu0 0.0
        %2558 = vmatpush2.msra.mxu0 %v2272
        %2559 = vmatprep.subr.mxu0 0.0
        %2560 = vmatpush2.msra.mxu0 %v2270
        %2561 = vmatprep.subr.mxu0 0.0
        %2562 = vmatpush2.msra.mxu0 %v2268
        %2563 = vmatprep.subr.mxu0 0.0
        %2564 = vmatpush2.msra.mxu0 %v2266
        %2565 = vmatprep.mubr.f32.mxu0 1.0
        %2566 = vmatmul.mubr.f32.gmra.mxu0 1.0
        %v2567 = vpop.f32.mrf.mxu0
        %v2568 = vadd.f32 %v2498, %v2567
        %v2569 = vpop.f32.mrf.mxu0
        %2570 = vdwg.mxu0
        %2571 = vmatprep.subr.mxu0 0.0
        %2572 = vmatpush1.msra.mxu0 %v2328
        %2573 = vmatprep.subr.mxu0 0.0
        %2574 = vmatpush1.msra.mxu0 %v2326
        %2575 = vmatprep.subr.mxu0 0.0
        %2576 = vmatpush1.msra.mxu0 %v2324
        %2577 = vmatprep.subr.mxu0 0.0
        %2578 = vmatpush1.msra.mxu0 %v2322
        %2579 = vmatprep.subr.mxu0 0.0
        %2580 = vmatpush1.msra.mxu0 %v2320
        %2581 = vmatprep.subr.mxu0 0.0
        %2582 = vmatpush1.msra.mxu0 %v2318
        %2583 = vmatprep.subr.mxu0 0.0
        %2584 = vmatpush1.msra.mxu0 %v2316
        %2585 = vmatprep.subr.mxu0 0.0
        %2586 = vmatpush1.msra.mxu0 %v2314
        %2587 = vmatprep.subr.mxu0 0.0
        %2588 = vmatpush1.msra.mxu0 %v2312
        %2589 = vmatprep.subr.mxu0 0.0
        %2590 = vmatpush1.msra.mxu0 %v2310
        %2591 = vmatprep.subr.mxu0 0.0
        %2592 = vmatpush1.msra.mxu0 %v2308
        %2593 = vmatprep.subr.mxu0 0.0
        %2594 = vmatpush1.msra.mxu0 %v2306
        %2595 = vmatprep.subr.mxu0 0.0
        %2596 = vmatpush1.msra.mxu0 %v2304
        %2597 = vmatprep.subr.mxu0 0.0
        %2598 = vmatpush1.msra.mxu0 %v2302
        %2599 = vmatprep.subr.mxu0 0.0
        %2600 = vmatpush1.msra.mxu0 %v2300
        %2601 = vmatprep.subr.mxu0 0.0
        %2602 = vmatpush1.msra.mxu0 %v2298
        %2603 = vmatprep.subr.mxu0 0.0
        %2604 = vmatpush2.msra.mxu0 %v2360
        %2605 = vmatprep.subr.mxu0 0.0
        %2606 = vmatpush2.msra.mxu0 %v2358
        %2607 = vmatprep.subr.mxu0 0.0
        %2608 = vmatpush2.msra.mxu0 %v2356
        %2609 = vmatprep.subr.mxu0 0.0
        %2610 = vmatpush2.msra.mxu0 %v2354
        %2611 = vmatprep.subr.mxu0 0.0
        %2612 = vmatpush2.msra.mxu0 %v2352
        %2613 = vmatprep.subr.mxu0 0.0
        %2614 = vmatpush2.msra.mxu0 %v2350
        %2615 = vmatprep.subr.mxu0 0.0
        %2616 = vmatpush2.msra.mxu0 %v2348
        %2617 = vmatprep.subr.mxu0 0.0
        %2618 = vmatpush2.msra.mxu0 %v2346
        %2619 = vmatprep.subr.mxu0 0.0
        %2620 = vmatpush2.msra.mxu0 %v2344
        %2621 = vmatprep.subr.mxu0 0.0
        %2622 = vmatpush2.msra.mxu0 %v2342
        %2623 = vmatprep.subr.mxu0 0.0
        %2624 = vmatpush2.msra.mxu0 %v2340
        %2625 = vmatprep.subr.mxu0 0.0
        %2626 = vmatpush2.msra.mxu0 %v2338
        %2627 = vmatprep.subr.mxu0 0.0
        %2628 = vmatpush2.msra.mxu0 %v2336
        %2629 = vmatprep.subr.mxu0 0.0
        %2630 = vmatpush2.msra.mxu0 %v2334
        %2631 = vmatprep.subr.mxu0 0.0
        %2632 = vmatpush2.msra.mxu0 %v2332
        %2633 = vmatprep.subr.mxu0 0.0
        %2634 = vmatpush2.msra.mxu0 %v2330
        %2635 = vmatprep.mubr.f32.mxu0 1.0
        %2636 = vmatmul.mubr.f32.gmra.mxu0 1.0
        %v2637 = vpop.f32.mrf.mxu0
        %v2638 = vadd.f32 %v2568, %v2637
        %v2639 = vpop.f32.mrf.mxu0
        %2640 = vdwg.mxu0
        %v2641 = vmul.f32 %v2638, 0.0009765625
        %v2642 = vlog2.pop %v2641
        %v2643 = vmul.f32 %v2642, 0.6931472
        %v2644 = vrcp.pop %v1976
        %v2645 = vmul.f32 %v2643, %v2644
        %v2646 = vmul.f32 %v2645, 1.442695
        %v2647 = vpow.pop %v2646
        %v2648 = vld [vmem:[%s4] sm:$0xff]
        %v2649 = vld [vmem:[%s4 + $0x8] sm:$0xff]
        %v2650 = vld [vmem:[%s4 + $0x10] sm:$0xff]
        %v2651 = vld [vmem:[%s4 + $0x18] sm:$0xff]
        %v2652 = vld [vmem:[%s5] sm:$0x1]
        %vm2653 = vcmask 261120
        %v2655 = vsel %vm2653, %v2647, 0
        %2657 = vmatprep.subr.mxu0 0.0
        %2658 = vmatpush1.msra.mxu0 0.0
        %2659 = vmatprep.subr.mxu0 0.0
        %2660 = vmatpush1.msra.mxu0 0.0
        %2661 = vmatprep.subr.mxu0 0.0
        %2662 = vmatpush1.msra.mxu0 0.0
        %2663 = vmatprep.subr.mxu0 0.0
        %2664 = vmatpush1.msra.mxu0 0.0
        %2665 = vmatprep.subr.mxu0 0.0
        %2666 = vmatpush1.msra.mxu0 0.0
        %2667 = vmatprep.subr.mxu0 0.0
        %2668 = vmatpush1.msra.mxu0 0.0
        %2669 = vmatprep.subr.mxu0 0.0
        %2670 = vmatpush1.msra.mxu0 0.0
        %2671 = vmatprep.subr.mxu0 0.0
        %2672 = vmatpush1.msra.mxu0 0.0
        %2673 = vmatprep.subr.mxu0 0.0
        %2674 = vmatpush1.msra.mxu0 0.0
        %2675 = vmatprep.subr.mxu0 0.0
        %2676 = vmatpush1.msra.mxu0 0.0
        %2677 = vmatprep.subr.mxu0 0.0
        %2678 = vmatpush1.msra.mxu0 0.0
        %2679 = vmatprep.subr.mxu0 0.0
        %2680 = vmatpush1.msra.mxu0 0.0
        %2681 = vmatprep.subr.mxu0 0.0
        %2682 = vmatpush1.msra.mxu0 %v2651
        %2683 = vmatprep.subr.mxu0 0.0
        %2684 = vmatpush1.msra.mxu0 %v2650
        %2685 = vmatprep.subr.mxu0 0.0
        %2686 = vmatpush1.msra.mxu0 %v2649
        %2687 = vmatprep.subr.mxu0 0.0
        %2688 = vmatpush1.msra.mxu0 %v2648
        %2689 = vmatprep.subr.mxu0 0.0
        %2690 = vmatpush2.msra.mxu0 0.0
        %2691 = vmatprep.subr.mxu0 0.0
        %2692 = vmatpush2.msra.mxu0 0.0
        %2693 = vmatprep.subr.mxu0 0.0
        %2694 = vmatpush2.msra.mxu0 0.0
        %2695 = vmatprep.subr.mxu0 0.0
        %2696 = vmatpush2.msra.mxu0 0.0
        %2697 = vmatprep.subr.mxu0 0.0
        %2698 = vmatpush2.msra.mxu0 0.0
        %2699 = vmatprep.subr.mxu0 0.0
        %2700 = vmatpush2.msra.mxu0 0.0
        %2701 = vmatprep.subr.mxu0 0.0
        %2702 = vmatpush2.msra.mxu0 0.0
        %2703 = vmatprep.subr.mxu0 0.0
        %2704 = vmatpush2.msra.mxu0 0.0
        %2705 = vmatprep.subr.mxu0 0.0
        %2706 = vmatpush2.msra.mxu0 0.0
        %2707 = vmatprep.subr.mxu0 0.0
        %2708 = vmatpush2.msra.mxu0 0.0
        %2709 = vmatprep.subr.mxu0 0.0
        %2710 = vmatpush2.msra.mxu0 0.0
        %2711 = vmatprep.subr.mxu0 0.0
        %2712 = vmatpush2.msra.mxu0 0.0
        %2713 = vmatprep.subr.mxu0 0.0
        %2714 = vmatpush2.msra.mxu0 0.0
        %2715 = vmatprep.subr.mxu0 0.0
        %2716 = vmatpush2.msra.mxu0 0.0
        %2717 = vmatprep.subr.mxu0 0.0
        %2718 = vmatpush2.msra.mxu0 0.0
        %2719 = vmatprep.subr.mxu0 0.0
        %2720 = vmatpush2.msra.mxu0 0.0
        %2721 = vmatprep.mubr.f32.mxu0 0.0
        %2722 = vmatmul.mubr.f32.gmra.mxu0 %v2655
        %v2723 = vpop.f32.mrf.mxu0
        %v2724 = vadd.f32 %v2652, %v2723
        %v2725 = vpop.f32.mrf.mxu0
        %2726 = vdwg.mxu0
        %v2727 = vmax.f32 %v2724, 1e-06
        %v2728 = vld [vmem:[%s6] sm:$0xff]
        %v2729 = vld [vmem:[%s6 + $0x8] sm:$0xff]
        %v2730 = vld [vmem:[%s6 + $0x10] sm:$0xff]
        %v2731 = vld [vmem:[%s6 + $0x18] sm:$0xff]
        %v2732 = vld [vmem:[%s6 + $0x20] sm:$0xff]
        %v2733 = vld [vmem:[%s6 + $0x28] sm:$0xff]
        %v2734 = vld [vmem:[%s6 + $0x30] sm:$0xff]
        %v2735 = vld [vmem:[%s6 + $0x38] sm:$0xff]
        %v2736 = vld [vmem:[%s7] sm:$0x1]
        %vm2737 = vcmask 523264
        %v2739 = vsel %vm2737, %v2727, 0
        %2741 = vmatprep.subr.mxu0 0.0
        %2742 = vmatpush1.msra.mxu0 0.0
        %2743 = vmatprep.subr.mxu0 0.0
        %2744 = vmatpush1.msra.mxu0 0.0
        %2745 = vmatprep.subr.mxu0 0.0
        %2746 = vmatpush1.msra.mxu0 0.0
        %2747 = vmatprep.subr.mxu0 0.0
        %2748 = vmatpush1.msra.mxu0 0.0
        %2749 = vmatprep.subr.mxu0 0.0
        %2750 = vmatpush1.msra.mxu0 0.0
        %2751 = vmatprep.subr.mxu0 0.0
        %2752 = vmatpush1.msra.mxu0 0.0
        %2753 = vmatprep.subr.mxu0 0.0
        %2754 = vmatpush1.msra.mxu0 0.0
        %2755 = vmatprep.subr.mxu0 0.0
        %2756 = vmatpush1.msra.mxu0 0.0
        %2757 = vmatprep.subr.mxu0 0.0
        %2758 = vmatpush1.msra.mxu0 %v2735
        %2759 = vmatprep.subr.mxu0 0.0
        %2760 = vmatpush1.msra.mxu0 %v2734
        %2761 = vmatprep.subr.mxu0 0.0
        %2762 = vmatpush1.msra.mxu0 %v2733
        %2763 = vmatprep.subr.mxu0 0.0
        %2764 = vmatpush1.msra.mxu0 %v2732
        %2765 = vmatprep.subr.mxu0 0.0
        %2766 = vmatpush1.msra.mxu0 %v2731
        %2767 = vmatprep.subr.mxu0 0.0
        %2768 = vmatpush1.msra.mxu0 %v2730
        %2769 = vmatprep.subr.mxu0 0.0
        %2770 = vmatpush1.msra.mxu0 %v2729
        %2771 = vmatprep.subr.mxu0 0.0
        %2772 = vmatpush1.msra.mxu0 %v2728
        %2773 = vmatprep.subr.mxu0 0.0
        %2774 = vmatpush2.msra.mxu0 0.0
        %2775 = vmatprep.subr.mxu0 0.0
        %2776 = vmatpush2.msra.mxu0 0.0
        %2777 = vmatprep.subr.mxu0 0.0
        %2778 = vmatpush2.msra.mxu0 0.0
        %2779 = vmatprep.subr.mxu0 0.0
        %2780 = vmatpush2.msra.mxu0 0.0
        %2781 = vmatprep.subr.mxu0 0.0
        %2782 = vmatpush2.msra.mxu0 0.0
        %2783 = vmatprep.subr.mxu0 0.0
        %2784 = vmatpush2.msra.mxu0 0.0
        %2785 = vmatprep.subr.mxu0 0.0
        %2786 = vmatpush2.msra.mxu0 0.0
        %2787 = vmatprep.subr.mxu0 0.0
        %2788 = vmatpush2.msra.mxu0 0.0
        %2789 = vmatprep.subr.mxu0 0.0
        %2790 = vmatpush2.msra.mxu0 0.0
        %2791 = vmatprep.subr.mxu0 0.0
        %2792 = vmatpush2.msra.mxu0 0.0
        %2793 = vmatprep.subr.mxu0 0.0
        %2794 = vmatpush2.msra.mxu0 0.0
        %2795 = vmatprep.subr.mxu0 0.0
        %2796 = vmatpush2.msra.mxu0 0.0
        %2797 = vmatprep.subr.mxu0 0.0
        %2798 = vmatpush2.msra.mxu0 0.0
        %2799 = vmatprep.subr.mxu0 0.0
        %2800 = vmatpush2.msra.mxu0 0.0
        %2801 = vmatprep.subr.mxu0 0.0
        %2802 = vmatpush2.msra.mxu0 0.0
        %2803 = vmatprep.subr.mxu0 0.0
        %2804 = vmatpush2.msra.mxu0 0.0
        %2805 = vmatprep.mubr.f32.mxu0 0.0
        %2806 = vmatmul.mubr.f32.gmra.mxu0 %v2739
        %v2807 = vpop.f32.mrf.mxu0
        %v2808 = vadd.f32 %v2736, %v2807
        %v2809 = vpop.f32.mrf.mxu0
        %2810 = vdwg.mxu0
        %v2811 = vmax.f32 %v2808, 0.0
        %v2812 = vld [vmem:[%s8] sm:$0xff]
        %v2813 = vld [vmem:[%s8 + $0x8] sm:$0xff]
        %v2814 = vld [vmem:[%s8 + $0x10] sm:$0xff]
        %v2815 = vld [vmem:[%s8 + $0x18] sm:$0xff]
        %v2816 = vld [vmem:[%s8 + $0x20] sm:$0xff]
        %v2817 = vld [vmem:[%s8 + $0x28] sm:$0xff]
        %v2818 = vld [vmem:[%s8 + $0x30] sm:$0xff]
        %v2819 = vld [vmem:[%s8 + $0x38] sm:$0xff]
        %v2820 = vld [vmem:[%s8 + $0x40] sm:$0xff]
        %v2821 = vld [vmem:[%s8 + $0x48] sm:$0xff]
        %v2822 = vld [vmem:[%s8 + $0x50] sm:$0xff]
        %v2823 = vld [vmem:[%s8 + $0x58] sm:$0xff]
        %v2824 = vld [vmem:[%s8 + $0x60] sm:$0xff]
        %v2825 = vld [vmem:[%s8 + $0x68] sm:$0xff]
        %v2826 = vld [vmem:[%s8 + $0x70] sm:$0xff]
        %v2827 = vld [vmem:[%s8 + $0x78] sm:$0xff]
        %v2828 = vld [vmem:[%s9] sm:$0x1]
        %2829 = vmatprep.subr.mxu0 0.0
        %2830 = vmatpush1.msra.mxu0 %v2827
        %2831 = vmatprep.subr.mxu0 0.0
        %2832 = vmatpush1.msra.mxu0 %v2826
        %2833 = vmatprep.subr.mxu0 0.0
        %2834 = vmatpush1.msra.mxu0 %v2825
        %2835 = vmatprep.subr.mxu0 0.0
        %2836 = vmatpush1.msra.mxu0 %v2824
        %2837 = vmatprep.subr.mxu0 0.0
        %2838 = vmatpush1.msra.mxu0 %v2823
        %2839 = vmatprep.subr.mxu0 0.0
        %2840 = vmatpush1.msra.mxu0 %v2822
        %2841 = vmatprep.subr.mxu0 0.0
        %2842 = vmatpush1.msra.mxu0 %v2821
        %2843 = vmatprep.subr.mxu0 0.0
        %2844 = vmatpush1.msra.mxu0 %v2820
        %2845 = vmatprep.subr.mxu0 0.0
        %2846 = vmatpush1.msra.mxu0 %v2819
        %2847 = vmatprep.subr.mxu0 0.0
        %2848 = vmatpush1.msra.mxu0 %v2818
        %2849 = vmatprep.subr.mxu0 0.0
        %2850 = vmatpush1.msra.mxu0 %v2817
        %2851 = vmatprep.subr.mxu0 0.0
        %2852 = vmatpush1.msra.mxu0 %v2816
        %2853 = vmatprep.subr.mxu0 0.0
        %2854 = vmatpush1.msra.mxu0 %v2815
        %2855 = vmatprep.subr.mxu0 0.0
        %2856 = vmatpush1.msra.mxu0 %v2814
        %2857 = vmatprep.subr.mxu0 0.0
        %2858 = vmatpush1.msra.mxu0 %v2813
        %2859 = vmatprep.subr.mxu0 0.0
        %2860 = vmatpush1.msra.mxu0 %v2812
        %2861 = vmatprep.subr.mxu0 0.0
        %2862 = vmatpush2.msra.mxu0 0.0
        %2863 = vmatprep.subr.mxu0 0.0
        %2864 = vmatpush2.msra.mxu0 0.0
        %2865 = vmatprep.subr.mxu0 0.0
        %2866 = vmatpush2.msra.mxu0 0.0
        %2867 = vmatprep.subr.mxu0 0.0
        %2868 = vmatpush2.msra.mxu0 0.0
        %2869 = vmatprep.subr.mxu0 0.0
        %2870 = vmatpush2.msra.mxu0 0.0
        %2871 = vmatprep.subr.mxu0 0.0
        %2872 = vmatpush2.msra.mxu0 0.0
        %2873 = vmatprep.subr.mxu0 0.0
        %2874 = vmatpush2.msra.mxu0 0.0
        %2875 = vmatprep.subr.mxu0 0.0
        %2876 = vmatpush2.msra.mxu0 0.0
        %2877 = vmatprep.subr.mxu0 0.0
        %2878 = vmatpush2.msra.mxu0 0.0
        %2879 = vmatprep.subr.mxu0 0.0
        %2880 = vmatpush2.msra.mxu0 0.0
        %2881 = vmatprep.subr.mxu0 0.0
        %2882 = vmatpush2.msra.mxu0 0.0
        %2883 = vmatprep.subr.mxu0 0.0
        %2884 = vmatpush2.msra.mxu0 0.0
        %2885 = vmatprep.subr.mxu0 0.0
        %2886 = vmatpush2.msra.mxu0 0.0
        %2887 = vmatprep.subr.mxu0 0.0
        %2888 = vmatpush2.msra.mxu0 0.0
        %2889 = vmatprep.subr.mxu0 0.0
        %2890 = vmatpush2.msra.mxu0 0.0
        %2891 = vmatprep.subr.mxu0 0.0
        %2892 = vmatpush2.msra.mxu0 0.0
        %2893 = vmatprep.mubr.f32.mxu0 0.0
        %2894 = vmatmul.mubr.f32.gmra.mxu0 %v2811
        %v2895 = vpop.f32.mrf.mxu0
        %v2896 = vadd.f32 %v2828, %v2895
        %v2897 = vpop.f32.mrf.mxu0
        %2898 = vdwg.mxu0
        %vm2899 = vcmask 253952
        %2900 = vst.msk [vmem:[%s352] sm:$0x1] %vm2899, %v2896
        %s2901 = sand.u32 %s248, 1
        %s2902 = scalar_lea.sflag [#allocation4], %s2901
        %s2903 = sand.u32 %s248, 1
        %s2904 = scalar_lea.vmem [#allocation3], %s2903
        // Predicated region
        $region61: #{gemcnn_forward.1} parent=59 // pred_check
          %p2905 = pneg %p258
        $region62: #{gemcnn_forward.1} parent=59 // pred_check_branch
          %2907 = sbr.rel (%p2905) target = $region64
        $region63: #{gemcnn_forward.1} parent=59 // pred_region
          %s2909 = ssub.s32 16, 16
          %2910 = vsyncadd %s2902, %s2909
          %s2911 = smul.addr %s25, 16
          %s2912 = scalar_lea.hbm %s10, %s2911
          %s2914 = sshll.u32 %s2904, 4
          %s2915 = int_to_ptr.vmem [resolvable:$true] %s2914
          %2917 = dma.vmem_to_hbm [thread:$0]  %s2915, 16, %s2912, %s2902
        $region64: #{gemcnn_forward.1} parent=59 // pred_fallthru
          _
      $region60: #{gemcnn_forward.1} parent=5 // pred_fallthru
        _
      %p2918 = scmp.le.s32.totalorder 2, %s20
      // Predicated region
      $region65: #{gemcnn_forward.1} parent=5 // pred_check
        %p2919 = pneg %p2918
      $region66: #{gemcnn_forward.1} parent=5 // pred_check_branch
        %2921 = sbr.rel (%p2919) target = $region68
      $region67: #{gemcnn_forward.1} parent=5 // pred_region
        %s2922 = ssub.s32 %s20, 2
        // Predicated region
        $region69: #{gemcnn_forward.1} parent=67 // pred_check
          %p2923 = pneg %p264
        $region70: #{gemcnn_forward.1} parent=67 // pred_check_branch
          %2925 = sbr.rel (%p2923) target = $region72
        $region71: #{gemcnn_forward.1} parent=67 // pred_region
          %s2926 = sand.u32 %s249, 1
          %s2927 = scalar_lea.sflag [#allocation4], %s2926
          %s2928 = sand.u32 %s249, 1
          %s2929 = scalar_lea.vmem [#allocation3], %s2928
          %2930 = dma.done %s2927, 16
        $region72: #{gemcnn_forward.1} parent=67 // pred_fallthru
          _
      $region68: #{gemcnn_forward.1} parent=5 // pred_fallthru
        _
    $region6: #{gemcnn_forward.1} parent=1 // loop_footer
      %s24 = sadd.s32 1, %s20
    $region7: #{gemcnn_forward.1} parent=1 // loop_footer_branch
      %19 = sbr.rel target = $region3
    $region8: #{gemcnn_forward.1} parent=1 // loop_exit
      _
    %2931 = vsyncpa [#allocation4], 1
    %s2932 = scalar_lea.sflag [#allocation4], 1
    %2933 = vsyncpa %s2932, 1

</llo_original>
